<compile_context>
chip_gen: v6e
topology: v6e:2x2x1
jax: 0.10.0
libtpu: 0.0.40
codegen_flags: <defaults>
</compile_context>

<pallas_src>
import jax
import jax.numpy as jnp
from jax.experimental import pallas as pl
from jax.experimental.pallas import tpu as pltpu


# ----------------------------------------------------------------------------
# Padding helpers (lane/sublane friendly shapes).
# ----------------------------------------------------------------------------
def _round_up(v, m):
    return (v + m - 1) // m * m


def _pad2(arr, rows, cols, dtype):
    out = jnp.zeros((rows, cols), dtype)
    return out.at[: arr.shape[0], : arr.shape[1]].set(arr.astype(dtype))


# ----------------------------------------------------------------------------
# Pallas kernel: entire forward pass (small problem, single grid point).
# ----------------------------------------------------------------------------
def _gnn_kernel(a_ref, m_ref, x_ref,
                w1_ref, b1_ref,           # GCNConv(num_features -> 128)
                w2_ref, b2_ref,           # GCNConv(128 -> 256)
                wr_ref, br_ref,           # residual_proj Linear(128 -> 256)
                wa1_ref, ba1_ref,         # attention Linear(256 -> 64, lane-padded)
                wa2_ref, ba2_ref,         # attention Linear(64 -> 1) as a VPU row
                wh_ref, bh_ref,           # fused heads Linear(256 -> G+Fam, lane-padded)
                emb_ref, heads_ref):
    f32 = jnp.float32
    bf16 = jnp.bfloat16

    a = a_ref[...]                        # [Np, Np] bf16 normalized adjacency
    x = x_ref[...]                        # [Np, Fp] bf16 node features

    # --- GCN layer 1: relu(A_hat @ (X W1) + b1) --- (bf16 MXU feeds, f32 acc)
    xw1 = jnp.dot(x, w1_ref[...], preferred_element_type=f32)
    h1 = jnp.dot(a, xw1.astype(bf16), preferred_element_type=f32) + b1_ref[...]
    h1 = jnp.maximum(h1, 0.0)             # [Np, 128] f32
    h1b = h1.astype(bf16)
    # F.dropout(p=0.5) is identity in eval mode.
    # TODO(synk): training-mode dropout would need pltpu.prng_seed/prng_random_bits.

    # --- GCN layer 2 + residual projection ---
    xw2 = jnp.dot(h1b, w2_ref[...], preferred_element_type=f32)
    h2 = jnp.dot(a, xw2.astype(bf16), preferred_element_type=f32) + b2_ref[...]
    h2 = h2 + jnp.dot(h1b, wr_ref[...], preferred_element_type=f32) + br_ref[...]
    h2 = jnp.maximum(h2, 0.0)             # [Np, 256] f32
    h2b = h2.astype(bf16)

    # --- attention MLP: Linear -> ReLU -> (VPU multiply + lane reduce) ---
    a1 = jnp.dot(h2b, wa1_ref[...], preferred_element_type=f32) + ba1_ref[...]
    a1 = jnp.maximum(a1, 0.0)             # [Np, 128] (cols >= 64 are exactly zero)
    node_w = jnp.sum(a1 * wa2_ref[...], axis=-1, keepdims=True) + ba2_ref[...]
    node_w = jax.nn.sigmoid(node_w)       # [Np, 1] f32

    # --- weighted global mean pool:  M @ (h2 * sigmoid(w)) ---
    weighted = (h2 * node_w).astype(bf16)
    emb = jnp.dot(m_ref[...], weighted, preferred_element_type=f32)   # [Bp, 256]
    emb_ref[...] = emb

    # --- fused classifier heads (single lane-dense 128-wide matmul) ---
    heads_ref[...] = (jnp.dot(emb.astype(bf16), wh_ref[...],
                              preferred_element_type=f32) + bh_ref[...])


def hierarchical_gnn_forward(a_hat, pool_m, x, params):
    """Fused forward pass. Returns (embeddings, group_logits, {"0": family_logits})."""
    N, F = x.shape
    B = pool_m.shape[0]
    H1 = params["w1"].shape[1]
    D = params["w2"].shape[1]
    G = params["wg"].shape[1]
    Fam = params["wf"].shape[1]

    Np = _round_up(N, 128)          # fill MXU rows
    Bp = _round_up(B, 8)            # full sublane group of pooled outputs
    Fp = _round_up(F, 128)          # lane-dense MXU K feed
    Ap = _round_up(64, 128)         # attention hidden dim, lane-dense
    Hp = _round_up(G + Fam, 128)    # fused heads output, lane-dense

    bf16, f32 = jnp.bfloat16, jnp.float32

    a_p = _pad2(a_hat, Np, Np, bf16)
    m_p = _pad2(pool_m, Bp, Np, bf16)
    x_p = _pad2(x, Np, Fp, bf16)

    w1_p = _pad2(params["w1"], Fp, H1, bf16)
    b1_p = params["b1"].astype(f32)
    w2_p = params["w2"].astype(bf16)
    b2_p = params["b2"].astype(f32)
    wr_p = params["wr"].astype(bf16)
    br_p = params["br"].astype(f32)
    wa1_p = _pad2(params["wa1"], D, Ap, bf16)
    ba1_p = _pad2(params["ba1"], 1, Ap, f32)
    wa2_p = _pad2(params["wa2"].T, 1, Ap, f32)      # [1, Ap] row for the VPU reduce
    ba2_p = params["ba2"].astype(f32)               # [1, 1]
    wh_p = _pad2(jnp.concatenate([params["wg"], params["wf"]], axis=1), D, Hp, bf16)
    bh_p = _pad2(jnp.concatenate([params["bg"], params["bf"]], axis=1), 1, Hp, f32)

    vmem = pl.BlockSpec(memory_space=pltpu.MemorySpace.VMEM)
    inputs = (a_p, m_p, x_p,
              w1_p, b1_p, w2_p, b2_p, wr_p, br_p,
              wa1_p, ba1_p, wa2_p, ba2_p, wh_p, bh_p)

    emb_p, heads_p = pl.pallas_call(
        _gnn_kernel,
        out_shape=(jax.ShapeDtypeStruct((Bp, D), f32),
                   jax.ShapeDtypeStruct((Bp, Hp), f32)),
        in_specs=[vmem] * len(inputs),
        out_specs=(vmem, vmem),
        compiler_params=pltpu.CompilerParams(vmem_limit_bytes=64 * 1024 * 1024),
    )(*inputs)

    emb = emb_p[:B]
    grp = heads_p[:B, :G]
    fam = heads_p[:B, G:G + Fam]
    return emb, grp, {"0": fam}


# ----------------------------------------------------------------------------
# Glue: deterministic parameter init + graph preprocessing (plain JAX).
# ----------------------------------------------------------------------------
def _glorot(key, fan_in, fan_out):
    limit = jnp.sqrt(6.0 / (fan_in + fan_out))
    return jax.random.uniform(key, (fan_in, fan_out), jnp.float32, -limit, limit)


def _linear_init(key, fan_in, fan_out):
    kw, kb = jax.random.split(key)
    bound = 1.0 / jnp.sqrt(fan_in)
    w = jax.random.uniform(kw, (fan_in, fan_out), jnp.float32, -bound, bound)
    b = jax.random.uniform(kb, (1, fan_out), jnp.float32, -bound, bound)
    return w, b


def make_params(key, num_features, num_groups=16, embedding_dim=256, num_families=8):
    keys = jax.random.split(key, 7)
    p = {}
    # GCNConv layers: glorot weight, zero bias (matches PyG GCNConv reset_parameters).
    p["w1"] = _glorot(keys[0], num_features, 128)
    p["b1"] = jnp.zeros((1, 128), jnp.float32)
    p["w2"] = _glorot(keys[1], 128, embedding_dim)
    p["b2"] = jnp.zeros((1, embedding_dim), jnp.float32)
    # torch.nn.Linear layers: PyTorch default uniform(-1/sqrt(fan_in), 1/sqrt(fan_in)).
    p["wr"], p["br"] = _linear_init(keys[2], 128, embedding_dim)
    p["wa1"], p["ba1"] = _linear_init(keys[3], embedding_dim, 64)
    p["wa2"], p["ba2"] = _linear_init(keys[4], 64, 1)
    p["wg"], p["bg"] = _linear_init(keys[5], embedding_dim, num_groups)
    p["wf"], p["bf"] = _linear_init(keys[6], embedding_dim, num_families)
    return p


def build_normalized_adjacency(edge_index, num_nodes):
    """A_hat = D^{-1/2} (A + I) D^{-1/2}  (PyG GCNConv normalization).
    Note: duplicate edges collapse to weight 1 (simple-graph assumption)."""
    src, dst = edge_index
    adj = jnp.zeros((num_nodes, num_nodes), jnp.float32)
    adj = adj.at[dst, src].set(1.0)               # message j -> i aggregates at row i
    adj = adj + jnp.eye(num_nodes, dtype=jnp.float32)
    deg = adj.sum(axis=1)
    d_inv_sqrt = jnp.where(deg > 0, 1.0 / jnp.sqrt(deg), 0.0)
    return d_inv_sqrt[:, None] * adj * d_inv_sqrt[None, :]


def build_pool_matrix(batch, num_graphs):
    """M[b, i] = 1/|graph b|  if batch[i] == b else 0   (global_mean_pool)."""
    one_hot = (batch[None, :] == jnp.arange(num_graphs)[:, None]).astype(jnp.float32)
    counts = one_hot.sum(axis=1, keepdims=True)
    return one_hot / jnp.maximum(counts, 1.0)


def reference_forward(a_hat, pool_m, x, p):
    """Pure-JAX reference with the same bf16-feed / f32-accumulate math."""
    bf = lambda t: t.astype(jnp.bfloat16)
    f32 = jnp.float32
    xw1 = jnp.dot(bf(x), bf(p["w1"]), preferred_element_type=f32)
    h1 = jax.nn.relu(jnp.dot(bf(a_hat), bf(xw1), preferred_element_type=f32) + p["b1"])
    xw2 = jnp.dot(bf(h1), bf(p["w2"]), preferred_element_type=f32)
    h2 = jnp.dot(bf(a_hat), bf(xw2), preferred_element_type=f32) + p["b2"]
    h2 = h2 + jnp.dot(bf(h1), bf(p["wr"]), preferred_element_type=f32) + p["br"]
    h2 = jax.nn.relu(h2)
    a1 = jax.nn.relu(jnp.dot(bf(h2), bf(p["wa1"]), preferred_element_type=f32) + p["ba1"])
    nw = jax.nn.sigmoid(
        jnp.sum(a1 * p["wa2"][:, 0][None, :], axis=-1, keepdims=True) + p["ba2"])
    emb = jnp.dot(bf(pool_m), bf(h2 * nw), preferred_element_type=f32)
    grp = jnp.dot(bf(emb), bf(p["wg"]), preferred_element_type=f32) + p["bg"]
    fam = jnp.dot(bf(emb), bf(p["wf"]), preferred_element_type=f32) + p["bf"]
    return emb, grp, fam


if __name__ == "__main__":
    key = jax.random.PRNGKey(0)
    k_x, k_p = jax.random.split(key)

    # Small deterministic problem: 2 graphs x 16 nodes, 16 node features.
    NUM_NODES_PER_GRAPH = 16
    NUM_GRAPHS = 2
    N = NUM_NODES_PER_GRAPH * NUM_GRAPHS
    NUM_FEATURES = 16
    NUM_GROUPS = 16
    EMBEDDING_DIM = 256
    NUM_FAMILIES = 8

    # Node features.
    x = jax.random.normal(k_x, (N, NUM_FEATURES), jnp.float32)

    # batch vector: nodes 0..15 -> graph 0, nodes 16..31 -> graph 1.
    batch = jnp.repeat(jnp.arange(NUM_GRAPHS), NUM_NODES_PER_GRAPH)

    # Deterministic symmetric ring edges within each graph.
    src_list, dst_list = [], []
    for g in range(NUM_GRAPHS):
        off = g * NUM_NODES_PER_GRAPH
        for i in range(NUM_NODES_PER_GRAPH):
            j = (i + 1) % NUM_NODES_PER_GRAPH
            src_list += [off + i, off + j]
            dst_list += [off + j, off + i]
    edge_index = jnp.array([src_list, dst_list], dtype=jnp.int32)   # [2, E]

    a_hat = build_normalized_adjacency(edge_index, N)
    pool_m = build_pool_matrix(batch, NUM_GRAPHS)
    params = make_params(k_p, NUM_FEATURES, NUM_GROUPS, EMBEDDING_DIM, NUM_FAMILIES)

    emb, grp, fam_logits = hierarchical_gnn_forward(a_hat, pool_m, x, params)
    jax.block_until_ready((emb, grp, fam_logits))

    # Correctness check against a pure-JAX reference of the same (bf16-fed) math.
    emb_ref, grp_ref, fam_ref = reference_forward(a_hat, pool_m, x, params)
    assert emb.shape == (NUM_GRAPHS, EMBEDDING_DIM)
    assert grp.shape == (NUM_GRAPHS, NUM_GROUPS)
    assert fam_logits["0"].shape == (NUM_GRAPHS, NUM_FAMILIES)
    assert jnp.allclose(emb, emb_ref, atol=1e-2, rtol=1e-2)
    assert jnp.allclose(grp, grp_ref, atol=1e-2, rtol=1e-2)
    assert jnp.allclose(fam_logits["0"], fam_ref, atol=1e-2, rtol=1e-2)

    print("KERNEL_OK")
</pallas_src>

<mosaic_0001>
module attributes {stable_mosaic.version = 11 : i64} {
  func.func @_gnn_kernel(%arg0: memref<128x128xbf16, #tpu.memory_space<vmem>>, %arg1: memref<8x128xbf16, #tpu.memory_space<vmem>>, %arg2: memref<128x128xbf16, #tpu.memory_space<vmem>>, %arg3: memref<128x128xbf16, #tpu.memory_space<vmem>>, %arg4: memref<1x128xf32, #tpu.memory_space<vmem>>, %arg5: memref<128x256xbf16, #tpu.memory_space<vmem>>, %arg6: memref<1x256xf32, #tpu.memory_space<vmem>>, %arg7: memref<128x256xbf16, #tpu.memory_space<vmem>>, %arg8: memref<1x256xf32, #tpu.memory_space<vmem>>, %arg9: memref<256x128xbf16, #tpu.memory_space<vmem>>, %arg10: memref<1x128xf32, #tpu.memory_space<vmem>>, %arg11: memref<1x128xf32, #tpu.memory_space<vmem>>, %arg12: memref<1x1xf32, #tpu.memory_space<vmem>>, %arg13: memref<256x128xbf16, #tpu.memory_space<vmem>>, %arg14: memref<1x128xf32, #tpu.memory_space<vmem>>, %arg15: memref<8x256xf32, #tpu.memory_space<vmem>>, %arg16: memref<8x128xf32, #tpu.memory_space<vmem>>) attributes {dimension_semantics = [], scalar_prefetch = 0 : i64, scratch_operands = 0 : i64, tpu.core_type = #tpu.core_type<tc>} {
    %c0 = arith.constant 0 : index
    %c0_0 = arith.constant 0 : index
    %0 = vector.load %arg0[%c0, %c0_0] : memref<128x128xbf16, #tpu.memory_space<vmem>>, vector<128x128xbf16>
    %c0_1 = arith.constant 0 : index
    %c0_2 = arith.constant 0 : index
    %1 = vector.load %arg2[%c0_1, %c0_2] : memref<128x128xbf16, #tpu.memory_space<vmem>>, vector<128x128xbf16>
    %c0_3 = arith.constant 0 : index
    %c0_4 = arith.constant 0 : index
    %2 = vector.load %arg3[%c0_3, %c0_4] : memref<128x128xbf16, #tpu.memory_space<vmem>>, vector<128x128xbf16>
    %cst = arith.constant dense<0.000000e+00> : vector<128x128xf32>
    %3 = tpu.matmul %1, %2, %cst {dimension_numbers = #tpu.dot_dimension_numbers<[1], [0], [0], [1], [0, 0, 1, 1], [], []>} : vector<128x128xbf16>, vector<128x128xbf16>, vector<128x128xf32> -> vector<128x128xf32>
    %4 = arith.truncf %3 : vector<128x128xf32> to vector<128x128xbf16>
    %cst_5 = arith.constant dense<0.000000e+00> : vector<128x128xf32>
    %5 = tpu.matmul %0, %4, %cst_5 {dimension_numbers = #tpu.dot_dimension_numbers<[1], [0], [0], [1], [0, 0, 1, 1], [], []>} : vector<128x128xbf16>, vector<128x128xbf16>, vector<128x128xf32> -> vector<128x128xf32>
    %c0_6 = arith.constant 0 : index
    %c0_7 = arith.constant 0 : index
    %6 = vector.load %arg4[%c0_6, %c0_7] : memref<1x128xf32, #tpu.memory_space<vmem>>, vector<1x128xf32>
    %7 = vector.broadcast %6 : vector<1x128xf32> to vector<128x128xf32>
    %8 = arith.addf %5, %7 : vector<128x128xf32>
    %cst_8 = arith.constant 0.000000e+00 : f32
    %9 = vector.broadcast %cst_8 : f32 to vector<128x128xf32>
    %10 = arith.maximumf %8, %9 : vector<128x128xf32>
    %11 = arith.truncf %10 : vector<128x128xf32> to vector<128x128xbf16>
    %c0_9 = arith.constant 0 : index
    %c0_10 = arith.constant 0 : index
    %12 = vector.load %arg5[%c0_9, %c0_10] : memref<128x256xbf16, #tpu.memory_space<vmem>>, vector<128x256xbf16>
    %cst_11 = arith.constant dense<0.000000e+00> : vector<128x256xf32>
    %13 = tpu.matmul %11, %12, %cst_11 {dimension_numbers = #tpu.dot_dimension_numbers<[1], [0], [0], [1], [0, 0, 1, 1], [], []>} : vector<128x128xbf16>, vector<128x256xbf16>, vector<128x256xf32> -> vector<128x256xf32>
    %14 = arith.truncf %13 : vector<128x256xf32> to vector<128x256xbf16>
    %cst_12 = arith.constant dense<0.000000e+00> : vector<128x256xf32>
    %15 = tpu.matmul %0, %14, %cst_12 {dimension_numbers = #tpu.dot_dimension_numbers<[1], [0], [0], [1], [0, 0, 1, 1], [], []>} : vector<128x128xbf16>, vector<128x256xbf16>, vector<128x256xf32> -> vector<128x256xf32>
    %c0_13 = arith.constant 0 : index
    %c0_14 = arith.constant 0 : index
    %16 = vector.load %arg6[%c0_13, %c0_14] : memref<1x256xf32, #tpu.memory_space<vmem>>, vector<1x256xf32>
    %17 = vector.broadcast %16 : vector<1x256xf32> to vector<128x256xf32>
    %18 = arith.addf %15, %17 : vector<128x256xf32>
    %c0_15 = arith.constant 0 : index
    %c0_16 = arith.constant 0 : index
    %19 = vector.load %arg7[%c0_15, %c0_16] : memref<128x256xbf16, #tpu.memory_space<vmem>>, vector<128x256xbf16>
    %cst_17 = arith.constant dense<0.000000e+00> : vector<128x256xf32>
    %20 = tpu.matmul %11, %19, %cst_17 {dimension_numbers = #tpu.dot_dimension_numbers<[1], [0], [0], [1], [0, 0, 1, 1], [], []>} : vector<128x128xbf16>, vector<128x256xbf16>, vector<128x256xf32> -> vector<128x256xf32>
    %21 = arith.addf %18, %20 : vector<128x256xf32>
    %c0_18 = arith.constant 0 : index
    %c0_19 = arith.constant 0 : index
    %22 = vector.load %arg8[%c0_18, %c0_19] : memref<1x256xf32, #tpu.memory_space<vmem>>, vector<1x256xf32>
    %23 = vector.broadcast %22 : vector<1x256xf32> to vector<128x256xf32>
    %24 = arith.addf %21, %23 : vector<128x256xf32>
    %cst_20 = arith.constant 0.000000e+00 : f32
    %25 = vector.broadcast %cst_20 : f32 to vector<128x256xf32>
    %26 = arith.maximumf %24, %25 : vector<128x256xf32>
    %27 = arith.truncf %26 : vector<128x256xf32> to vector<128x256xbf16>
    %c0_21 = arith.constant 0 : index
    %c0_22 = arith.constant 0 : index
    %28 = vector.load %arg9[%c0_21, %c0_22] : memref<256x128xbf16, #tpu.memory_space<vmem>>, vector<256x128xbf16>
    %cst_23 = arith.constant dense<0.000000e+00> : vector<128x128xf32>
    %29 = tpu.matmul %27, %28, %cst_23 {dimension_numbers = #tpu.dot_dimension_numbers<[1], [0], [0], [1], [0, 0, 1, 1], [], []>} : vector<128x256xbf16>, vector<256x128xbf16>, vector<128x128xf32> -> vector<128x128xf32>
    %c0_24 = arith.constant 0 : index
    %c0_25 = arith.constant 0 : index
    %30 = vector.load %arg10[%c0_24, %c0_25] : memref<1x128xf32, #tpu.memory_space<vmem>>, vector<1x128xf32>
    %31 = vector.broadcast %30 : vector<1x128xf32> to vector<128x128xf32>
    %32 = arith.addf %29, %31 : vector<128x128xf32>
    %cst_26 = arith.constant 0.000000e+00 : f32
    %33 = vector.broadcast %cst_26 : f32 to vector<128x128xf32>
    %34 = arith.maximumf %32, %33 : vector<128x128xf32>
    %c0_27 = arith.constant 0 : index
    %c0_28 = arith.constant 0 : index
    %35 = vector.load %arg11[%c0_27, %c0_28] : memref<1x128xf32, #tpu.memory_space<vmem>>, vector<1x128xf32>
    %36 = vector.broadcast %35 : vector<1x128xf32> to vector<128x128xf32>
    %37 = arith.mulf %34, %36 : vector<128x128xf32>
    %cst_29 = arith.constant dense<0.000000e+00> : vector<128xf32>
    %38 = vector.multi_reduction <add>, %37, %cst_29 [1] : vector<128x128xf32> to vector<128xf32>
    %39 = vector.shape_cast %38 : vector<128xf32> to vector<128x1xf32>
    %c0_30 = arith.constant 0 : index
    %c0_31 = arith.constant 0 : index
    %40 = vector.load %arg12[%c0_30, %c0_31] : memref<1x1xf32, #tpu.memory_space<vmem>>, vector<1x1xf32>
    %41 = vector.broadcast %40 : vector<1x1xf32> to vector<128x1xf32>
    %42 = arith.addf %39, %41 : vector<128x1xf32>
    %43 = arith.negf %42 : vector<128x1xf32>
    %44 = math.exp %43 : vector<128x1xf32>
    %cst_32 = arith.constant 1.000000e+00 : f32
    %45 = vector.broadcast %cst_32 : f32 to vector<128x1xf32>
    %46 = arith.addf %45, %44 : vector<128x1xf32>
    %47 = arith.divf %45, %46 : vector<128x1xf32>
    %48 = vector.broadcast %47 : vector<128x1xf32> to vector<128x256xf32>
    %49 = arith.mulf %26, %48 : vector<128x256xf32>
    %50 = arith.truncf %49 : vector<128x256xf32> to vector<128x256xbf16>
    %c0_33 = arith.constant 0 : index
    %c0_34 = arith.constant 0 : index
    %51 = vector.load %arg1[%c0_33, %c0_34] : memref<8x128xbf16, #tpu.memory_space<vmem>>, vector<8x128xbf16>
    %cst_35 = arith.constant dense<0.000000e+00> : vector<8x256xf32>
    %52 = tpu.matmul %51, %50, %cst_35 {dimension_numbers = #tpu.dot_dimension_numbers<[1], [0], [0], [1], [0, 0, 1, 1], [], []>} : vector<8x128xbf16>, vector<128x256xbf16>, vector<8x256xf32> -> vector<8x256xf32>
    %c0_36 = arith.constant 0 : index
    %c0_37 = arith.constant 0 : index
    %53 = vector.load %arg15[%c0_36, %c0_37] : memref<8x256xf32, #tpu.memory_space<vmem>>, vector<8x256xf32>
    tpu.vector_store %arg15[%c0_36, %c0_37], %52 {strides = array<i32>} : memref<8x256xf32, #tpu.memory_space<vmem>>, vector<8x256xf32>,
    %54 = arith.truncf %52 : vector<8x256xf32> to vector<8x256xbf16>
    %c0_38 = arith.constant 0 : index
    %c0_39 = arith.constant 0 : index
    %55 = vector.load %arg13[%c0_38, %c0_39] : memref<256x128xbf16, #tpu.memory_space<vmem>>, vector<256x128xbf16>
    %cst_40 = arith.constant dense<0.000000e+00> : vector<8x128xf32>
    %56 = tpu.matmul %54, %55, %cst_40 {dimension_numbers = #tpu.dot_dimension_numbers<[1], [0], [0], [1], [0, 0, 1, 1], [], []>} : vector<8x256xbf16>, vector<256x128xbf16>, vector<8x128xf32> -> vector<8x128xf32>
    %c0_41 = arith.constant 0 : index
    %c0_42 = arith.constant 0 : index
    %57 = vector.load %arg14[%c0_41, %c0_42] : memref<1x128xf32, #tpu.memory_space<vmem>>, vector<1x128xf32>
    %58 = vector.broadcast %57 : vector<1x128xf32> to vector<8x128xf32>
    %59 = arith.addf %56, %58 : vector<8x128xf32>
    %c0_43 = arith.constant 0 : index
    %c0_44 = arith.constant 0 : index
    %60 = vector.load %arg16[%c0_43, %c0_44] : memref<8x128xf32, #tpu.memory_space<vmem>>, vector<8x128xf32>
    tpu.vector_store %arg16[%c0_43, %c0_44], %59 {strides = array<i32>} : memref<8x128xf32, #tpu.memory_space<vmem>>, vector<8x128xf32>,
    return
  }
}

</mosaic_0001>

<llo_original>
// kernel: tpu_custom_call.1
$region0: #{tpu_custom_call.1}
  #allocation0 [shape = 'u32[]', space=smem, size = 0x4, offset = 0x4, fixed_abs, tag = 'smem constant byte address 0x4 - core index']
  #allocation1 [shape = 'u32[144,128]{1,0:T(1,128)}', space=vmem, size = 0x12000, scoped, tag = 'internal scratch']
  #allocation2 [shape = 'f32[1,1]{1,0:T(1,128)S(1)}', space=vmem, size = 0x200, scoped, tag = 'scoped memory for tpu_custom_call.1']
  %s0 = inlined_call_operand.hbm [shape: bf16[128,128], index: 0, kind: input, shape index: {}]
  %s1 = inlined_call_operand.hbm [shape: bf16[8,128], index: 1, kind: input, shape index: {}]
  %s2 = inlined_call_operand.hbm [shape: bf16[128,128], index: 2, kind: input, shape index: {}]
  %s3 = inlined_call_operand.hbm [shape: bf16[128,128], index: 3, kind: input, shape index: {}]
  %s4 = inlined_call_operand.vmem [shape: f32[1,128], index: 4, kind: input, shape index: {}]
  %s5 = inlined_call_operand.hbm [shape: bf16[128,256], index: 5, kind: input, shape index: {}]
  %s6 = inlined_call_operand.vmem [shape: f32[1,256], index: 6, kind: input, shape index: {}]
  %s7 = inlined_call_operand.hbm [shape: bf16[128,256], index: 7, kind: input, shape index: {}]
  %s8 = inlined_call_operand.vmem [shape: f32[1,256], index: 8, kind: input, shape index: {}]
  %s9 = inlined_call_operand.hbm [shape: bf16[256,128], index: 9, kind: input, shape index: {}]
  %s10 = inlined_call_operand.vmem [shape: f32[1,128], index: 10, kind: input, shape index: {}]
  %s11 = inlined_call_operand.vmem [shape: f32[1,128], index: 11, kind: input, shape index: {}]
  %s12 = inlined_call_operand.<no memory space> [shape: f32[1,1], index: 12, kind: input, shape index: {}]
  %s13 = inlined_call_operand.hbm [shape: bf16[256,128], index: 13, kind: input, shape index: {}]
  %s14 = inlined_call_operand.vmem [shape: f32[1,128], index: 14, kind: input, shape index: {}]
  %s15 = inlined_call_operand.hbm [shape: f32[8,256], index: 15, kind: output, shape index: {0}]
  %s16 = inlined_call_operand.hbm [shape: f32[8,128], index: 16, kind: output, shape index: {1}]
  %17 = xla_tuple %s15, %s16
  %s18 = sld [smem:[#allocation0]]
  $region110: #{tpu_custom_call.1} parent=0
    _
  %s20 = ssub.s32 1, %s18
  %s21 = scalar_select 0, %s20, %s18
  %v22 = vstv %s12
  %23 = vst [vmem:[#allocation2] sm:$0x1] %v22
  $region1: #{tpu_custom_call.1} parent=0
    #allocation3 [shape = 'u8[32768]{0}', space=vmem, size = 0x8000, scoped, tag = 'input window, operand 0, single buffered']
    #allocation4 [shape = 's32[1]{0}', space=sflag, size = 0x4, scoped, tag = 'scoped memory for tpu_custom_call.1']
    #allocation5 [shape = 's32[1]{0}', space=sflag, size = 0x4, scoped, tag = 'scoped memory for tpu_custom_call.1']
    #allocation6 [shape = 'u8[2048]{0}', space=vmem, size = 0x800, scoped, tag = 'input window, operand 1, single buffered']
    #allocation7 [shape = 's32[1]{0}', space=sflag, size = 0x4, scoped, tag = 'scoped memory for tpu_custom_call.1']
    #allocation8 [shape = 'u8[32768]{0}', space=vmem, size = 0x8000, scoped, tag = 'input window, operand 2, single buffered']
    #allocation9 [shape = 'u8[32768]{0}', space=vmem, size = 0x8000, scoped, tag = 'input window, operand 3, single buffered']
    #allocation10 [shape = 's32[1]{0}', space=sflag, size = 0x4, scoped, tag = 'scoped memory for tpu_custom_call.1']
    #allocation11 [shape = 'u8[65536]{0}', space=vmem, size = 0x10000, scoped, tag = 'input window, operand 5, single buffered']
    #allocation12 [shape = 'u8[65536]{0}', space=vmem, size = 0x10000, scoped, tag = 'input window, operand 7, single buffered']
    #allocation13 [shape = 's32[1]{0}', space=sflag, size = 0x4, scoped, tag = 'scoped memory for tpu_custom_call.1']
    #allocation14 [shape = 'u8[65536]{0}', space=vmem, size = 0x10000, scoped, tag = 'input window, operand 9, single buffered']
    #allocation15 [shape = 'u8[65536]{0}', space=vmem, size = 0x10000, scoped, tag = 'input window, operand 13, single buffered']
    #allocation16 [shape = 's32[1]{0}', space=sflag, size = 0x4, scoped, tag = 'scoped memory for tpu_custom_call.1']
    #allocation17 [shape = 'u8[8192]{0}', space=vmem, size = 0x2000, scoped, tag = 'output window, operand 0, single buffered']
    #allocation18 [shape = 'u8[4096]{0}', space=vmem, size = 0x1000, scoped, tag = 'output window, operand 1, single buffered']
    #allocation19 [shape = 's32[1]{0}', space=sflag, size = 0x4, scoped, tag = 'scoped memory for tpu_custom_call.1']
    %24 = vsyncpa [#allocation4], 0
    %25 = vsyncpa [#allocation7], 0
    %26 = vsyncpa [#allocation10], 0
    %27 = vsyncpa [#allocation13], 0
    %28 = vsyncpa [#allocation16], 0
    %29 = vsyncpa [#allocation5], 0
    %30 = vsyncpa [#allocation19], 0
    // Predicated region
    $region2: #{tpu_custom_call.1} parent=1 // pred_check
      _
    $region3: #{tpu_custom_call.1} parent=1 // pred_check_branch
      %32 = sbr.rel (0) target = $region5
    $region4: #{tpu_custom_call.1} parent=1 // pred_region
      %s34 = ssub.s32 1024, 1024
      %35 = vsyncadd [#allocation4], %s34
      %s36 = sshll.u32 [#allocation3], 4
      %s37 = int_to_ptr.vmem [resolvable:$true] %s36
      %42 = dma.hbm_to_vmem [thread:$0]  %s0, 1024, %s37, [#allocation4], 64, 64, 4
    $region5: #{tpu_custom_call.1} parent=1 // pred_fallthru
      _
    // Predicated region
    $region6: #{tpu_custom_call.1} parent=1 // pred_check
      _
    $region7: #{tpu_custom_call.1} parent=1 // pred_check_branch
      %44 = sbr.rel (0) target = $region9
    $region8: #{tpu_custom_call.1} parent=1 // pred_region
      %s46 = ssub.s32 64, 64
      %47 = vsyncadd [#allocation7], %s46
      %s49 = sshll.u32 [#allocation6], 4
      %s50 = int_to_ptr.vmem [resolvable:$true] %s49
      %52 = dma.hbm_to_vmem [thread:$0]  %s1, 64, %s50, [#allocation7]
    $region9: #{tpu_custom_call.1} parent=1 // pred_fallthru
      _
    // Predicated region
    $region10: #{tpu_custom_call.1} parent=1 // pred_check
      _
    $region11: #{tpu_custom_call.1} parent=1 // pred_check_branch
      %54 = sbr.rel (0) target = $region13
    $region12: #{tpu_custom_call.1} parent=1 // pred_region
      %s56 = ssub.s32 1024, 1024
      %57 = vsyncadd [#allocation7], %s56
      %s58 = sshll.u32 [#allocation8], 4
      %s59 = int_to_ptr.vmem [resolvable:$true] %s58
      %64 = dma.hbm_to_vmem [thread:$0]  %s2, 1024, %s59, [#allocation7], 64, 64, 4
    $region13: #{tpu_custom_call.1} parent=1 // pred_fallthru
      _
    // Predicated region
    $region14: #{tpu_custom_call.1} parent=1 // pred_check
      _
    $region15: #{tpu_custom_call.1} parent=1 // pred_check_branch
      %66 = sbr.rel (0) target = $region17
    $region16: #{tpu_custom_call.1} parent=1 // pred_region
      %s68 = ssub.s32 1024, 1024
      %69 = vsyncadd [#allocation10], %s68
      %s70 = sshll.u32 [#allocation9], 4
      %s71 = int_to_ptr.vmem [resolvable:$true] %s70
      %76 = dma.hbm_to_vmem [thread:$0]  %s3, 1024, %s71, [#allocation10], 64, 64, 4
    $region17: #{tpu_custom_call.1} parent=1 // pred_fallthru
      _
    // Predicated region
    $region18: #{tpu_custom_call.1} parent=1 // pred_check
      _
    $region19: #{tpu_custom_call.1} parent=1 // pred_check_branch
      %78 = sbr.rel (0) target = $region21
    $region20: #{tpu_custom_call.1} parent=1 // pred_region
      _
    $region21: #{tpu_custom_call.1} parent=1 // pred_fallthru
      _
    // Predicated region
    $region22: #{tpu_custom_call.1} parent=1 // pred_check
      _
    $region23: #{tpu_custom_call.1} parent=1 // pred_check_branch
      %80 = sbr.rel (0) target = $region25
    $region24: #{tpu_custom_call.1} parent=1 // pred_region
      %s82 = ssub.s32 2048, 2048
      %83 = vsyncadd [#allocation10], %s82
      %s84 = sshll.u32 [#allocation11], 4
      %s85 = int_to_ptr.vmem [resolvable:$true] %s84
      %90 = dma.hbm_to_vmem [thread:$0]  %s5, 2048, %s85, [#allocation10], 128, 128, 8
    $region25: #{tpu_custom_call.1} parent=1 // pred_fallthru
      _
    // Predicated region
    $region26: #{tpu_custom_call.1} parent=1 // pred_check
      _
    $region27: #{tpu_custom_call.1} parent=1 // pred_check_branch
      %92 = sbr.rel (0) target = $region29
    $region28: #{tpu_custom_call.1} parent=1 // pred_region
      _
    $region29: #{tpu_custom_call.1} parent=1 // pred_fallthru
      _
    // Predicated region
    $region30: #{tpu_custom_call.1} parent=1 // pred_check
      _
    $region31: #{tpu_custom_call.1} parent=1 // pred_check_branch
      %94 = sbr.rel (0) target = $region33
    $region32: #{tpu_custom_call.1} parent=1 // pred_region
      %s96 = ssub.s32 2048, 2048
      %97 = vsyncadd [#allocation13], %s96
      %s98 = sshll.u32 [#allocation12], 4
      %s99 = int_to_ptr.vmem [resolvable:$true] %s98
      %104 = dma.hbm_to_vmem [thread:$0]  %s7, 2048, %s99, [#allocation13], 128, 128, 8
    $region33: #{tpu_custom_call.1} parent=1 // pred_fallthru
      _
    // Predicated region
    $region34: #{tpu_custom_call.1} parent=1 // pred_check
      _
    $region35: #{tpu_custom_call.1} parent=1 // pred_check_branch
      %106 = sbr.rel (0) target = $region37
    $region36: #{tpu_custom_call.1} parent=1 // pred_region
      _
    $region37: #{tpu_custom_call.1} parent=1 // pred_fallthru
      _
    // Predicated region
    $region38: #{tpu_custom_call.1} parent=1 // pred_check
      _
    $region39: #{tpu_custom_call.1} parent=1 // pred_check_branch
      %108 = sbr.rel (0) target = $region41
    $region40: #{tpu_custom_call.1} parent=1 // pred_region
      %s110 = ssub.s32 2048, 2048
      %111 = vsyncadd [#allocation13], %s110
      %s112 = sshll.u32 [#allocation14], 4
      %s113 = int_to_ptr.vmem [resolvable:$true] %s112
      %118 = dma.hbm_to_vmem [thread:$0]  %s9, 2048, %s113, [#allocation13], 64, 64, 4
    $region41: #{tpu_custom_call.1} parent=1 // pred_fallthru
      _
    // Predicated region
    $region42: #{tpu_custom_call.1} parent=1 // pred_check
      _
    $region43: #{tpu_custom_call.1} parent=1 // pred_check_branch
      %120 = sbr.rel (0) target = $region45
    $region44: #{tpu_custom_call.1} parent=1 // pred_region
      _
    $region45: #{tpu_custom_call.1} parent=1 // pred_fallthru
      _
    // Predicated region
    $region46: #{tpu_custom_call.1} parent=1 // pred_check
      _
    $region47: #{tpu_custom_call.1} parent=1 // pred_check_branch
      %122 = sbr.rel (0) target = $region49
    $region48: #{tpu_custom_call.1} parent=1 // pred_region
      _
    $region49: #{tpu_custom_call.1} parent=1 // pred_fallthru
      _
    // Predicated region
    $region50: #{tpu_custom_call.1} parent=1 // pred_check
      _
    $region51: #{tpu_custom_call.1} parent=1 // pred_check_branch
      %124 = sbr.rel (0) target = $region53
    $region52: #{tpu_custom_call.1} parent=1 // pred_region
      _
    $region53: #{tpu_custom_call.1} parent=1 // pred_fallthru
      _
    // Predicated region
    $region54: #{tpu_custom_call.1} parent=1 // pred_check
      _
    $region55: #{tpu_custom_call.1} parent=1 // pred_check_branch
      %126 = sbr.rel (0) target = $region57
    $region56: #{tpu_custom_call.1} parent=1 // pred_region
      %s128 = ssub.s32 2048, 2048
      %129 = vsyncadd [#allocation16], %s128
      %s130 = sshll.u32 [#allocation15], 4
      %s131 = int_to_ptr.vmem [resolvable:$true] %s130
      %136 = dma.hbm_to_vmem [thread:$0]  %s13, 2048, %s131, [#allocation16], 64, 64, 4
    $region57: #{tpu_custom_call.1} parent=1 // pred_fallthru
      _
    // Predicated region
    $region58: #{tpu_custom_call.1} parent=1 // pred_check
      _
    $region59: #{tpu_custom_call.1} parent=1 // pred_check_branch
      %138 = sbr.rel (0) target = $region61
    $region60: #{tpu_custom_call.1} parent=1 // pred_region
      _
    $region61: #{tpu_custom_call.1} parent=1 // pred_fallthru
      _
    // Predicated region
    $region62: #{tpu_custom_call.1} parent=1 // pred_check
      _
    $region63: #{tpu_custom_call.1} parent=1 // pred_check_branch
      %140 = sbr.rel (0) target = $region65
    $region64: #{tpu_custom_call.1} parent=1 // pred_region
      %141 = dma.done [#allocation4], 1024
    $region65: #{tpu_custom_call.1} parent=1 // pred_fallthru
      _
    // Predicated region
    $region66: #{tpu_custom_call.1} parent=1 // pred_check
      _
    $region67: #{tpu_custom_call.1} parent=1 // pred_check_branch
      %143 = sbr.rel (0) target = $region69
    $region68: #{tpu_custom_call.1} parent=1 // pred_region
      %144 = dma.done [#allocation7], 64
    $region69: #{tpu_custom_call.1} parent=1 // pred_fallthru
      _
    // Predicated region
    $region70: #{tpu_custom_call.1} parent=1 // pred_check
      _
    $region71: #{tpu_custom_call.1} parent=1 // pred_check_branch
      %146 = sbr.rel (0) target = $region73
    $region72: #{tpu_custom_call.1} parent=1 // pred_region
      %147 = dma.done [#allocation7], 1024
    $region73: #{tpu_custom_call.1} parent=1 // pred_fallthru
      _
    // Predicated region
    $region74: #{tpu_custom_call.1} parent=1 // pred_check
      _
    $region75: #{tpu_custom_call.1} parent=1 // pred_check_branch
      %149 = sbr.rel (0) target = $region77
    $region76: #{tpu_custom_call.1} parent=1 // pred_region
      %150 = dma.done [#allocation10], 1024
    $region77: #{tpu_custom_call.1} parent=1 // pred_fallthru
      _
    // Predicated region
    $region78: #{tpu_custom_call.1} parent=1 // pred_check
      _
    $region79: #{tpu_custom_call.1} parent=1 // pred_check_branch
      %152 = sbr.rel (0) target = $region81
    $region80: #{tpu_custom_call.1} parent=1 // pred_region
      %153 = dma.done [#allocation10], 2048
    $region81: #{tpu_custom_call.1} parent=1 // pred_fallthru
      _
    // Predicated region
    $region82: #{tpu_custom_call.1} parent=1 // pred_check
      _
    $region83: #{tpu_custom_call.1} parent=1 // pred_check_branch
      %155 = sbr.rel (0) target = $region85
    $region84: #{tpu_custom_call.1} parent=1 // pred_region
      %156 = dma.done [#allocation13], 2048
    $region85: #{tpu_custom_call.1} parent=1 // pred_fallthru
      _
    // Predicated region
    $region86: #{tpu_custom_call.1} parent=1 // pred_check
      _
    $region87: #{tpu_custom_call.1} parent=1 // pred_check_branch
      %158 = sbr.rel (0) target = $region89
    $region88: #{tpu_custom_call.1} parent=1 // pred_region
      %159 = dma.done [#allocation13], 2048
    $region89: #{tpu_custom_call.1} parent=1 // pred_fallthru
      _
    // Predicated region
    $region90: #{tpu_custom_call.1} parent=1 // pred_check
      _
    $region91: #{tpu_custom_call.1} parent=1 // pred_check_branch
      %161 = sbr.rel (0) target = $region93
    $region92: #{tpu_custom_call.1} parent=1 // pred_region
      %162 = dma.done [#allocation16], 2048
    $region93: #{tpu_custom_call.1} parent=1 // pred_fallthru
      _
    %v164 = vld [vmem:[#allocation3] sm:$0xf]
    %v165 = vld [vmem:[#allocation3 + $0x4] sm:$0xf]
    %v166 = vld [vmem:[#allocation3 + $0x8] sm:$0xf]
    %v167 = vld [vmem:[#allocation3 + $0xc] sm:$0xf]
    %v168 = vld [vmem:[#allocation3 + $0x10] sm:$0xf]
    %v169 = vld [vmem:[#allocation3 + $0x14] sm:$0xf]
    %v170 = vld [vmem:[#allocation3 + $0x18] sm:$0xf]
    %v171 = vld [vmem:[#allocation3 + $0x1c] sm:$0xf]
    %v172 = vld [vmem:[#allocation3 + $0x20] sm:$0xf]
    %v173 = vld [vmem:[#allocation3 + $0x24] sm:$0xf]
    %v174 = vld [vmem:[#allocation3 + $0x28] sm:$0xf]
    %v175 = vld [vmem:[#allocation3 + $0x2c] sm:$0xf]
    %v176 = vld [vmem:[#allocation3 + $0x30] sm:$0xf]
    %v177 = vld [vmem:[#allocation3 + $0x34] sm:$0xf]
    %v178 = vld [vmem:[#allocation3 + $0x38] sm:$0xf]
    %v179 = vld [vmem:[#allocation3 + $0x3c] sm:$0xf]
    %v180 = vld [vmem:[#allocation8] sm:$0xf]
    %v181 = vld [vmem:[#allocation8 + $0x4] sm:$0xf]
    %v182 = vld [vmem:[#allocation8 + $0x8] sm:$0xf]
    %v183 = vld [vmem:[#allocation8 + $0xc] sm:$0xf]
    %v184 = vld [vmem:[#allocation8 + $0x10] sm:$0xf]
    %v185 = vld [vmem:[#allocation8 + $0x14] sm:$0xf]
    %v186 = vld [vmem:[#allocation8 + $0x18] sm:$0xf]
    %v187 = vld [vmem:[#allocation8 + $0x1c] sm:$0xf]
    %v188 = vld [vmem:[#allocation8 + $0x20] sm:$0xf]
    %v189 = vld [vmem:[#allocation8 + $0x24] sm:$0xf]
    %v190 = vld [vmem:[#allocation8 + $0x28] sm:$0xf]
    %v191 = vld [vmem:[#allocation8 + $0x2c] sm:$0xf]
    %v192 = vld [vmem:[#allocation8 + $0x30] sm:$0xf]
    %v193 = vld [vmem:[#allocation8 + $0x34] sm:$0xf]
    %v194 = vld [vmem:[#allocation8 + $0x38] sm:$0xf]
    %v195 = vld [vmem:[#allocation8 + $0x3c] sm:$0xf]
    %v196 = vld [vmem:[#allocation9] sm:$0xf]
    %v197 = vld [vmem:[#allocation9 + $0x4] sm:$0xf]
    %v198 = vld [vmem:[#allocation9 + $0x8] sm:$0xf]
    %v199 = vld [vmem:[#allocation9 + $0xc] sm:$0xf]
    %v200 = vld [vmem:[#allocation9 + $0x10] sm:$0xf]
    %v201 = vld [vmem:[#allocation9 + $0x14] sm:$0xf]
    %v202 = vld [vmem:[#allocation9 + $0x18] sm:$0xf]
    %v203 = vld [vmem:[#allocation9 + $0x1c] sm:$0xf]
    %v204 = vld [vmem:[#allocation9 + $0x20] sm:$0xf]
    %v205 = vld [vmem:[#allocation9 + $0x24] sm:$0xf]
    %v206 = vld [vmem:[#allocation9 + $0x28] sm:$0xf]
    %v207 = vld [vmem:[#allocation9 + $0x2c] sm:$0xf]
    %v208 = vld [vmem:[#allocation9 + $0x30] sm:$0xf]
    %v209 = vld [vmem:[#allocation9 + $0x34] sm:$0xf]
    %v210 = vld [vmem:[#allocation9 + $0x38] sm:$0xf]
    %v211 = vld [vmem:[#allocation9 + $0x3c] sm:$0xf]
    %v228 = vunpack.c.l.b16 %v180
    %v229 = vunpack.c.l.b16 %v181
    %v230 = vunpack.c.l.b16 %v182
    %v231 = vunpack.c.l.b16 %v183
    %v232 = vunpack.c.l.b16 %v184
    %v233 = vunpack.c.l.b16 %v185
    %v234 = vunpack.c.l.b16 %v186
    %v235 = vunpack.c.l.b16 %v187
    %v236 = vunpack.c.l.b16 %v188
    %v237 = vunpack.c.l.b16 %v189
    %v238 = vunpack.c.l.b16 %v190
    %v239 = vunpack.c.l.b16 %v191
    %v240 = vunpack.c.l.b16 %v192
    %v241 = vunpack.c.l.b16 %v193
    %v242 = vunpack.c.l.b16 %v194
    %v243 = vunpack.c.l.b16 %v195
    %v244 = vpack.c.b16 %v229, %v228
    %v245 = vpack.c.b16 %v231, %v230
    %v246 = vpack.c.b16 %v233, %v232
    %v247 = vpack.c.b16 %v235, %v234
    %v248 = vpack.c.b16 %v237, %v236
    %v249 = vpack.c.b16 %v239, %v238
    %v250 = vpack.c.b16 %v241, %v240
    %v251 = vpack.c.b16 %v243, %v242
    %v276 = vunpack.c.l.b16 %v196
    %v277 = vunpack.c.l.b16 %v197
    %v278 = vunpack.c.l.b16 %v198
    %v279 = vunpack.c.l.b16 %v199
    %v280 = vunpack.c.l.b16 %v200
    %v281 = vunpack.c.l.b16 %v201
    %v282 = vunpack.c.l.b16 %v202
    %v283 = vunpack.c.l.b16 %v203
    %v284 = vunpack.c.l.b16 %v204
    %v285 = vunpack.c.l.b16 %v205
    %v286 = vunpack.c.l.b16 %v206
    %v287 = vunpack.c.l.b16 %v207
    %v288 = vunpack.c.l.b16 %v208
    %v289 = vunpack.c.l.b16 %v209
    %v290 = vunpack.c.l.b16 %v210
    %v291 = vunpack.c.l.b16 %v211
    %v292 = vpack.c.b16 %v277, %v276
    %v293 = vpack.c.b16 %v279, %v278
    %v294 = vpack.c.b16 %v281, %v280
    %v295 = vpack.c.b16 %v283, %v282
    %v296 = vpack.c.b16 %v285, %v284
    %v297 = vpack.c.b16 %v287, %v286
    %v298 = vpack.c.b16 %v289, %v288
    %v299 = vpack.c.b16 %v291, %v290
    %308 = vmatprep.subr.bf16.mxu0 0
    %309 = vmatpush1.bf16.msra.mxu0 %v299
    %310 = vmatprep.subr.bf16.mxu0 0
    %311 = vmatpush1.bf16.msra.mxu0 %v298
    %312 = vmatprep.subr.bf16.mxu0 0
    %313 = vmatpush1.bf16.msra.mxu0 %v297
    %314 = vmatprep.subr.bf16.mxu0 0
    %315 = vmatpush1.bf16.msra.mxu0 %v296
    %316 = vmatprep.subr.bf16.mxu0 0
    %317 = vmatpush1.bf16.msra.mxu0 %v295
    %318 = vmatprep.subr.bf16.mxu0 0
    %319 = vmatpush1.bf16.msra.mxu0 %v294
    %320 = vmatprep.subr.bf16.mxu0 0
    %321 = vmatpush1.bf16.msra.mxu0 %v293
    %322 = vmatprep.subr.bf16.mxu0 0
    %323 = vmatpush1.bf16.msra.mxu0 %v292
    %324 = vmatprep.subr.bf16.mxu0 0
    %325 = vmatpush2.bf16.msra.mxu0 0
    %326 = vmatprep.subr.bf16.mxu0 0
    %327 = vmatpush2.bf16.msra.mxu0 0
    %328 = vmatprep.subr.bf16.mxu0 0
    %329 = vmatpush2.bf16.msra.mxu0 0
    %330 = vmatprep.subr.bf16.mxu0 0
    %331 = vmatpush2.bf16.msra.mxu0 0
    %332 = vmatprep.subr.bf16.mxu0 0
    %333 = vmatpush2.bf16.msra.mxu0 0
    %334 = vmatprep.subr.bf16.mxu0 0
    %335 = vmatpush2.bf16.msra.mxu0 0
    %336 = vmatprep.subr.bf16.mxu0 0
    %337 = vmatpush2.bf16.msra.mxu0 0
    %338 = vmatprep.subr.bf16.mxu0 0
    %339 = vmatpush2.bf16.msra.mxu0 0
    %340 = vmatprep.mubr.bf16.mxu0 0
    %341 = vmatmul.mubr.bf16.gmra.mxu0 %v244
    %v342 = vpop.f32.mrf.mxu0
    %v343 = vadd.f32 0.0, %v342
    %v344 = vpop.f32.mrf.mxu0
    %v345 = vpop.f32.mrf.mxu0
    %v346 = vadd.f32 0.0, %v345
    %v347 = vpop.f32.mrf.mxu0
    %348 = vmatprep.mubr.bf16.mxu0 0
    %349 = vmatmul.mubr.bf16.gmra.mxu0 %v245
    %v350 = vpop.f32.mrf.mxu0
    %v351 = vadd.f32 0.0, %v350
    %v352 = vpop.f32.mrf.mxu0
    %v353 = vpop.f32.mrf.mxu0
    %v354 = vadd.f32 0.0, %v353
    %v355 = vpop.f32.mrf.mxu0
    %356 = vmatprep.mubr.bf16.mxu0 0
    %357 = vmatmul.mubr.bf16.gmra.mxu0 %v246
    %v358 = vpop.f32.mrf.mxu0
    %v359 = vadd.f32 0.0, %v358
    %v360 = vpop.f32.mrf.mxu0
    %v361 = vpop.f32.mrf.mxu0
    %v362 = vadd.f32 0.0, %v361
    %v363 = vpop.f32.mrf.mxu0
    %364 = vmatprep.mubr.bf16.mxu0 0
    %365 = vmatmul.mubr.bf16.gmra.mxu0 %v247
    %v366 = vpop.f32.mrf.mxu0
    %v367 = vadd.f32 0.0, %v366
    %v368 = vpop.f32.mrf.mxu0
    %v369 = vpop.f32.mrf.mxu0
    %v370 = vadd.f32 0.0, %v369
    %v371 = vpop.f32.mrf.mxu0
    %372 = vmatprep.mubr.bf16.mxu0 0
    %373 = vmatmul.mubr.bf16.gmra.mxu0 %v248
    %v374 = vpop.f32.mrf.mxu0
    %v375 = vadd.f32 0.0, %v374
    %v376 = vpop.f32.mrf.mxu0
    %v377 = vpop.f32.mrf.mxu0
    %v378 = vadd.f32 0.0, %v377
    %v379 = vpop.f32.mrf.mxu0
    %380 = vmatprep.mubr.bf16.mxu0 0
    %381 = vmatmul.mubr.bf16.gmra.mxu0 %v249
    %v382 = vpop.f32.mrf.mxu0
    %v383 = vadd.f32 0.0, %v382
    %v384 = vpop.f32.mrf.mxu0
    %v385 = vpop.f32.mrf.mxu0
    %v386 = vadd.f32 0.0, %v385
    %v387 = vpop.f32.mrf.mxu0
    %388 = vmatprep.mubr.bf16.mxu0 0
    %389 = vmatmul.mubr.bf16.gmra.mxu0 %v250
    %v390 = vpop.f32.mrf.mxu0
    %v391 = vadd.f32 0.0, %v390
    %v392 = vpop.f32.mrf.mxu0
    %v393 = vpop.f32.mrf.mxu0
    %v394 = vadd.f32 0.0, %v393
    %v395 = vpop.f32.mrf.mxu0
    %396 = vmatprep.mubr.bf16.mxu0 0
    %397 = vmatmul.mubr.bf16.gmra.mxu0 %v251
    %v398 = vpop.f32.mrf.mxu0
    %v399 = vadd.f32 0.0, %v398
    %v400 = vpop.f32.mrf.mxu0
    %v401 = vpop.f32.mrf.mxu0
    %v402 = vadd.f32 0.0, %v401
    %v403 = vpop.f32.mrf.mxu0
    %404 = vdwg.mxu0
    %v405 = vpack.c.bf16 %v346, %v343
    %v406 = vpack.c.bf16 %v354, %v351
    %v407 = vpack.c.bf16 %v362, %v359
    %v408 = vpack.c.bf16 %v370, %v367
    %v409 = vpack.c.bf16 %v378, %v375
    %v410 = vpack.c.bf16 %v386, %v383
    %v411 = vpack.c.bf16 %v394, %v391
    %v412 = vpack.c.bf16 %v402, %v399
    %v413 = vld [vmem:[%s4] sm:$0x1]
    %v415 = vlaneseq
    %v416 = vshrl.u32 %v415, 7
    %v417 = vsub.s32 0, %v416
    %v418 = vrot.slane %v413, %v417
    %v436 = vunpack.c.l.b16 %v164
    %v437 = vunpack.c.l.b16 %v165
    %v438 = vunpack.c.l.b16 %v166
    %v439 = vunpack.c.l.b16 %v167
    %v440 = vunpack.c.l.b16 %v168
    %v441 = vunpack.c.l.b16 %v169
    %v442 = vunpack.c.l.b16 %v170
    %v443 = vunpack.c.l.b16 %v171
    %v444 = vunpack.c.l.b16 %v172
    %v445 = vunpack.c.l.b16 %v173
    %v446 = vunpack.c.l.b16 %v174
    %v447 = vunpack.c.l.b16 %v175
    %v448 = vunpack.c.l.b16 %v176
    %v449 = vunpack.c.l.b16 %v177
    %v450 = vunpack.c.l.b16 %v178
    %v451 = vunpack.c.l.b16 %v179
    %v452 = vpack.c.b16 %v437, %v436
    %v453 = vpack.c.b16 %v439, %v438
    %v454 = vpack.c.b16 %v441, %v440
    %v455 = vpack.c.b16 %v443, %v442
    %v456 = vpack.c.b16 %v445, %v444
    %v457 = vpack.c.b16 %v447, %v446
    %v458 = vpack.c.b16 %v449, %v448
    %v459 = vpack.c.b16 %v451, %v450
    %468 = vmatprep.subr.bf16.mxu0 0
    %469 = vmatpush1.bf16.msra.mxu0 %v412
    %470 = vmatprep.subr.bf16.mxu0 0
    %471 = vmatpush1.bf16.msra.mxu0 %v411
    %472 = vmatprep.subr.bf16.mxu0 0
    %473 = vmatpush1.bf16.msra.mxu0 %v410
    %474 = vmatprep.subr.bf16.mxu0 0
    %475 = vmatpush1.bf16.msra.mxu0 %v409
    %476 = vmatprep.subr.bf16.mxu0 0
    %477 = vmatpush1.bf16.msra.mxu0 %v408
    %478 = vmatprep.subr.bf16.mxu0 0
    %479 = vmatpush1.bf16.msra.mxu0 %v407
    %480 = vmatprep.subr.bf16.mxu0 0
    %481 = vmatpush1.bf16.msra.mxu0 %v406
    %482 = vmatprep.subr.bf16.mxu0 0
    %483 = vmatpush1.bf16.msra.mxu0 %v405
    %484 = vmatprep.subr.bf16.mxu0 0
    %485 = vmatpush2.bf16.msra.mxu0 0
    %486 = vmatprep.subr.bf16.mxu0 0
    %487 = vmatpush2.bf16.msra.mxu0 0
    %488 = vmatprep.subr.bf16.mxu0 0
    %489 = vmatpush2.bf16.msra.mxu0 0
    %490 = vmatprep.subr.bf16.mxu0 0
    %491 = vmatpush2.bf16.msra.mxu0 0
    %492 = vmatprep.subr.bf16.mxu0 0
    %493 = vmatpush2.bf16.msra.mxu0 0
    %494 = vmatprep.subr.bf16.mxu0 0
    %495 = vmatpush2.bf16.msra.mxu0 0
    %496 = vmatprep.subr.bf16.mxu0 0
    %497 = vmatpush2.bf16.msra.mxu0 0
    %498 = vmatprep.subr.bf16.mxu0 0
    %499 = vmatpush2.bf16.msra.mxu0 0
    %500 = vmatprep.mubr.bf16.mxu0 0
    %501 = vmatmul.mubr.bf16.gmra.mxu0 %v452
    %v502 = vpop.f32.mrf.mxu0
    %v503 = vadd.f32 %v418, %v502
    %v504 = vpop.f32.mrf.mxu0
    %v505 = vpop.f32.mrf.mxu0
    %v506 = vadd.f32 %v418, %v505
    %v507 = vpop.f32.mrf.mxu0
    %508 = vmatprep.mubr.bf16.mxu0 0
    %509 = vmatmul.mubr.bf16.gmra.mxu0 %v453
    %v510 = vpop.f32.mrf.mxu0
    %v511 = vadd.f32 %v418, %v510
    %v512 = vpop.f32.mrf.mxu0
    %v513 = vpop.f32.mrf.mxu0
    %v514 = vadd.f32 %v418, %v513
    %v515 = vpop.f32.mrf.mxu0
    %516 = vmatprep.mubr.bf16.mxu0 0
    %517 = vmatmul.mubr.bf16.gmra.mxu0 %v454
    %v518 = vpop.f32.mrf.mxu0
    %v519 = vadd.f32 %v418, %v518
    %v520 = vpop.f32.mrf.mxu0
    %v521 = vpop.f32.mrf.mxu0
    %v522 = vadd.f32 %v418, %v521
    %v523 = vpop.f32.mrf.mxu0
    %524 = vmatprep.mubr.bf16.mxu0 0
    %525 = vmatmul.mubr.bf16.gmra.mxu0 %v455
    %v526 = vpop.f32.mrf.mxu0
    %v527 = vadd.f32 %v418, %v526
    %v528 = vpop.f32.mrf.mxu0
    %v529 = vpop.f32.mrf.mxu0
    %v530 = vadd.f32 %v418, %v529
    %v531 = vpop.f32.mrf.mxu0
    %532 = vmatprep.mubr.bf16.mxu0 0
    %533 = vmatmul.mubr.bf16.gmra.mxu0 %v456
    %v534 = vpop.f32.mrf.mxu0
    %v535 = vadd.f32 %v418, %v534
    %v536 = vpop.f32.mrf.mxu0
    %v537 = vpop.f32.mrf.mxu0
    %v538 = vadd.f32 %v418, %v537
    %v539 = vpop.f32.mrf.mxu0
    %540 = vmatprep.mubr.bf16.mxu0 0
    %541 = vmatmul.mubr.bf16.gmra.mxu0 %v457
    %v542 = vpop.f32.mrf.mxu0
    %v543 = vadd.f32 %v418, %v542
    %v544 = vpop.f32.mrf.mxu0
    %v545 = vpop.f32.mrf.mxu0
    %v546 = vadd.f32 %v418, %v545
    %v547 = vpop.f32.mrf.mxu0
    %548 = vmatprep.mubr.bf16.mxu0 0
    %549 = vmatmul.mubr.bf16.gmra.mxu0 %v458
    %v550 = vpop.f32.mrf.mxu0
    %v551 = vadd.f32 %v418, %v550
    %v552 = vpop.f32.mrf.mxu0
    %v553 = vpop.f32.mrf.mxu0
    %v554 = vadd.f32 %v418, %v553
    %v555 = vpop.f32.mrf.mxu0
    %556 = vmatprep.mubr.bf16.mxu0 0
    %557 = vmatmul.mubr.bf16.gmra.mxu0 %v459
    %v558 = vpop.f32.mrf.mxu0
    %v559 = vadd.f32 %v418, %v558
    %v560 = vpop.f32.mrf.mxu0
    %v561 = vpop.f32.mrf.mxu0
    %v562 = vadd.f32 %v418, %v561
    %v563 = vpop.f32.mrf.mxu0
    %564 = vdwg.mxu0
    %v565 = vmax.f32 %v503, 0.0
    %v566 = vmax.f32 %v506, 0.0
    %v567 = vmax.f32 %v511, 0.0
    %v568 = vmax.f32 %v514, 0.0
    %v569 = vmax.f32 %v519, 0.0
    %v570 = vmax.f32 %v522, 0.0
    %v571 = vmax.f32 %v527, 0.0
    %v572 = vmax.f32 %v530, 0.0
    %v573 = vmax.f32 %v535, 0.0
    %v574 = vmax.f32 %v538, 0.0
    %v575 = vmax.f32 %v543, 0.0
    %v576 = vmax.f32 %v546, 0.0
    %v577 = vmax.f32 %v551, 0.0
    %v578 = vmax.f32 %v554, 0.0
    %v579 = vmax.f32 %v559, 0.0
    %v580 = vmax.f32 %v562, 0.0
    %v581 = vpack.c.bf16 %v566, %v565
    %v582 = vpack.c.bf16 %v568, %v567
    %v583 = vpack.c.bf16 %v570, %v569
    %v584 = vpack.c.bf16 %v572, %v571
    %v585 = vpack.c.bf16 %v574, %v573
    %v586 = vpack.c.bf16 %v576, %v575
    %v587 = vpack.c.bf16 %v578, %v577
    %v588 = vpack.c.bf16 %v580, %v579
    %v589 = vld [vmem:[#allocation11] sm:$0xff]
    %v590 = vld [vmem:[#allocation11 + $0x8] sm:$0xff]
    %v591 = vld [vmem:[#allocation11 + $0x10] sm:$0xff]
    %v592 = vld [vmem:[#allocation11 + $0x18] sm:$0xff]
    %v593 = vld [vmem:[#allocation11 + $0x20] sm:$0xff]
    %v594 = vld [vmem:[#allocation11 + $0x28] sm:$0xff]
    %v595 = vld [vmem:[#allocation11 + $0x30] sm:$0xff]
    %v596 = vld [vmem:[#allocation11 + $0x38] sm:$0xff]
    %v597 = vld [vmem:[#allocation11 + $0x40] sm:$0xff]
    %v598 = vld [vmem:[#allocation11 + $0x48] sm:$0xff]
    %v599 = vld [vmem:[#allocation11 + $0x50] sm:$0xff]
    %v600 = vld [vmem:[#allocation11 + $0x58] sm:$0xff]
    %v601 = vld [vmem:[#allocation11 + $0x60] sm:$0xff]
    %v602 = vld [vmem:[#allocation11 + $0x68] sm:$0xff]
    %v603 = vld [vmem:[#allocation11 + $0x70] sm:$0xff]
    %v604 = vld [vmem:[#allocation11 + $0x78] sm:$0xff]
    %v621 = vunpack.c.l.b16 %v589
    %v622 = vunpack.c.h.b16 %v589
    %v623 = vunpack.c.l.b16 %v590
    %v624 = vunpack.c.h.b16 %v590
    %v625 = vunpack.c.l.b16 %v591
    %v626 = vunpack.c.h.b16 %v591
    %v627 = vunpack.c.l.b16 %v592
    %v628 = vunpack.c.h.b16 %v592
    %v629 = vunpack.c.l.b16 %v593
    %v630 = vunpack.c.h.b16 %v593
    %v631 = vunpack.c.l.b16 %v594
    %v632 = vunpack.c.h.b16 %v594
    %v633 = vunpack.c.l.b16 %v595
    %v634 = vunpack.c.h.b16 %v595
    %v635 = vunpack.c.l.b16 %v596
    %v636 = vunpack.c.h.b16 %v596
    %v637 = vunpack.c.l.b16 %v597
    %v638 = vunpack.c.h.b16 %v597
    %v639 = vunpack.c.l.b16 %v598
    %v640 = vunpack.c.h.b16 %v598
    %v641 = vunpack.c.l.b16 %v599
    %v642 = vunpack.c.h.b16 %v599
    %v643 = vunpack.c.l.b16 %v600
    %v644 = vunpack.c.h.b16 %v600
    %v645 = vunpack.c.l.b16 %v601
    %v646 = vunpack.c.h.b16 %v601
    %v647 = vunpack.c.l.b16 %v602
    %v648 = vunpack.c.h.b16 %v602
    %v649 = vunpack.c.l.b16 %v603
    %v650 = vunpack.c.h.b16 %v603
    %v651 = vunpack.c.l.b16 %v604
    %v652 = vunpack.c.h.b16 %v604
    %v653 = vpack.c.b16 %v623, %v621
    %v654 = vpack.c.b16 %v624, %v622
    %v655 = vpack.c.b16 %v627, %v625
    %v656 = vpack.c.b16 %v628, %v626
    %v657 = vpack.c.b16 %v631, %v629
    %v658 = vpack.c.b16 %v632, %v630
    %v659 = vpack.c.b16 %v635, %v633
    %v660 = vpack.c.b16 %v636, %v634
    %v661 = vpack.c.b16 %v639, %v637
    %v662 = vpack.c.b16 %v640, %v638
    %v663 = vpack.c.b16 %v643, %v641
    %v664 = vpack.c.b16 %v644, %v642
    %v665 = vpack.c.b16 %v647, %v645
    %v666 = vpack.c.b16 %v648, %v646
    %v667 = vpack.c.b16 %v651, %v649
    %v668 = vpack.c.b16 %v652, %v650
    %685 = vmatprep.subr.bf16.mxu0 %v668
    %686 = vmatpush1.bf16.msra.mxu0 %v667
    %687 = vmatprep.subr.bf16.mxu0 %v666
    %688 = vmatpush1.bf16.msra.mxu0 %v665
    %689 = vmatprep.subr.bf16.mxu0 %v664
    %690 = vmatpush1.bf16.msra.mxu0 %v663
    %691 = vmatprep.subr.bf16.mxu0 %v662
    %692 = vmatpush1.bf16.msra.mxu0 %v661
    %693 = vmatprep.subr.bf16.mxu0 %v660
    %694 = vmatpush1.bf16.msra.mxu0 %v659
    %695 = vmatprep.subr.bf16.mxu0 %v658
    %696 = vmatpush1.bf16.msra.mxu0 %v657
    %697 = vmatprep.subr.bf16.mxu0 %v656
    %698 = vmatpush1.bf16.msra.mxu0 %v655
    %699 = vmatprep.subr.bf16.mxu0 %v654
    %700 = vmatpush1.bf16.msra.mxu0 %v653
    %701 = vmatprep.subr.bf16.mxu0 0
    %702 = vmatpush2.bf16.msra.mxu0 0
    %703 = vmatprep.subr.bf16.mxu0 0
    %704 = vmatpush2.bf16.msra.mxu0 0
    %705 = vmatprep.subr.bf16.mxu0 0
    %706 = vmatpush2.bf16.msra.mxu0 0
    %707 = vmatprep.subr.bf16.mxu0 0
    %708 = vmatpush2.bf16.msra.mxu0 0
    %709 = vmatprep.subr.bf16.mxu0 0
    %710 = vmatpush2.bf16.msra.mxu0 0
    %711 = vmatprep.subr.bf16.mxu0 0
    %712 = vmatpush2.bf16.msra.mxu0 0
    %713 = vmatprep.subr.bf16.mxu0 0
    %714 = vmatpush2.bf16.msra.mxu0 0
    %715 = vmatprep.subr.bf16.mxu0 0
    %716 = vmatpush2.bf16.msra.mxu0 0
    %717 = vmatprep.mubr.bf16.mxu0 0
    %718 = vmatmul.mubr.bf16.gmra.mxu0 %v581
    %v719 = vpop.f32.mrf.mxu0
    %v720 = vadd.f32 0.0, %v719
    %v721 = vpop.f32.mrf.mxu0
    %v722 = vadd.f32 0.0, %v721
    %v723 = vpop.f32.mrf.mxu0
    %v724 = vadd.f32 0.0, %v723
    %v725 = vpop.f32.mrf.mxu0
    %v726 = vadd.f32 0.0, %v725
    %727 = vmatprep.mubr.bf16.mxu0 0
    %728 = vmatmul.mubr.bf16.gmra.mxu0 %v582
    %v729 = vpop.f32.mrf.mxu0
    %v730 = vadd.f32 0.0, %v729
    %v731 = vpop.f32.mrf.mxu0
    %v732 = vadd.f32 0.0, %v731
    %v733 = vpop.f32.mrf.mxu0
    %v734 = vadd.f32 0.0, %v733
    %v735 = vpop.f32.mrf.mxu0
    %v736 = vadd.f32 0.0, %v735
    %737 = vmatprep.mubr.bf16.mxu0 0
    %738 = vmatmul.mubr.bf16.gmra.mxu0 %v583
    %v739 = vpop.f32.mrf.mxu0
    %v740 = vadd.f32 0.0, %v739
    %v741 = vpop.f32.mrf.mxu0
    %v742 = vadd.f32 0.0, %v741
    %v743 = vpop.f32.mrf.mxu0
    %v744 = vadd.f32 0.0, %v743
    %v745 = vpop.f32.mrf.mxu0
    %v746 = vadd.f32 0.0, %v745
    %747 = vmatprep.mubr.bf16.mxu0 0
    %748 = vmatmul.mubr.bf16.gmra.mxu0 %v584
    %v749 = vpop.f32.mrf.mxu0
    %v750 = vadd.f32 0.0, %v749
    %v751 = vpop.f32.mrf.mxu0
    %v752 = vadd.f32 0.0, %v751
    %v753 = vpop.f32.mrf.mxu0
    %v754 = vadd.f32 0.0, %v753
    %v755 = vpop.f32.mrf.mxu0
    %v756 = vadd.f32 0.0, %v755
    %757 = vmatprep.mubr.bf16.mxu0 0
    %758 = vmatmul.mubr.bf16.gmra.mxu0 %v585
    %v759 = vpop.f32.mrf.mxu0
    %v760 = vadd.f32 0.0, %v759
    %v761 = vpop.f32.mrf.mxu0
    %v762 = vadd.f32 0.0, %v761
    %v763 = vpop.f32.mrf.mxu0
    %v764 = vadd.f32 0.0, %v763
    %v765 = vpop.f32.mrf.mxu0
    %v766 = vadd.f32 0.0, %v765
    %767 = vmatprep.mubr.bf16.mxu0 0
    %768 = vmatmul.mubr.bf16.gmra.mxu0 %v586
    %v769 = vpop.f32.mrf.mxu0
    %v770 = vadd.f32 0.0, %v769
    %v771 = vpop.f32.mrf.mxu0
    %v772 = vadd.f32 0.0, %v771
    %v773 = vpop.f32.mrf.mxu0
    %v774 = vadd.f32 0.0, %v773
    %v775 = vpop.f32.mrf.mxu0
    %v776 = vadd.f32 0.0, %v775
    %777 = vmatprep.mubr.bf16.mxu0 0
    %778 = vmatmul.mubr.bf16.gmra.mxu0 %v587
    %v779 = vpop.f32.mrf.mxu0
    %v780 = vadd.f32 0.0, %v779
    %v781 = vpop.f32.mrf.mxu0
    %v782 = vadd.f32 0.0, %v781
    %v783 = vpop.f32.mrf.mxu0
    %v784 = vadd.f32 0.0, %v783
    %v785 = vpop.f32.mrf.mxu0
    %v786 = vadd.f32 0.0, %v785
    %787 = vmatprep.mubr.bf16.mxu0 0
    %788 = vmatmul.mubr.bf16.gmra.mxu0 %v588
    %v789 = vpop.f32.mrf.mxu0
    %v790 = vadd.f32 0.0, %v789
    %v791 = vpop.f32.mrf.mxu0
    %v792 = vadd.f32 0.0, %v791
    %v793 = vpop.f32.mrf.mxu0
    %v794 = vadd.f32 0.0, %v793
    %v795 = vpop.f32.mrf.mxu0
    %v796 = vadd.f32 0.0, %v795
    %797 = vdwg.mxu0
    %v798 = vpack.c.bf16 %v724, %v720
    %v799 = vpack.c.bf16 %v726, %v722
    %v800 = vpack.c.bf16 %v734, %v730
    %v801 = vpack.c.bf16 %v736, %v732
    %v802 = vpack.c.bf16 %v744, %v740
    %v803 = vpack.c.bf16 %v746, %v742
    %v804 = vpack.c.bf16 %v754, %v750
    %v805 = vpack.c.bf16 %v756, %v752
    %v806 = vpack.c.bf16 %v764, %v760
    %v807 = vpack.c.bf16 %v766, %v762
    %v808 = vpack.c.bf16 %v774, %v770
    %v809 = vpack.c.bf16 %v776, %v772
    %v810 = vpack.c.bf16 %v784, %v780
    %v811 = vpack.c.bf16 %v786, %v782
    %v812 = vpack.c.bf16 %v794, %v790
    %v813 = vpack.c.bf16 %v796, %v792
    %v814 = vld [vmem:[%s6] sm:$0x3]
    %v816 = vlaneseq
    %v817 = vshrl.u32 %v816, 7
    %v818 = vsub.s32 0, %v817
    %v819 = vrot.slane %v814, %v818
    %v820 = vlaneseq
    %v821 = vshrl.u32 %v820, 7
    %v822 = vsub.s32 1, %v821
    %v823 = vrot.slane %v814, %v822
    %826 = vmatprep.subr.bf16.mxu0 %v813
    %827 = vmatpush1.bf16.msra.mxu0 %v812
    %828 = vmatprep.subr.bf16.mxu0 %v811
    %829 = vmatpush1.bf16.msra.mxu0 %v810
    %830 = vmatprep.subr.bf16.mxu0 %v809
    %831 = vmatpush1.bf16.msra.mxu0 %v808
    %832 = vmatprep.subr.bf16.mxu0 %v807
    %833 = vmatpush1.bf16.msra.mxu0 %v806
    %834 = vmatprep.subr.bf16.mxu0 %v805
    %835 = vmatpush1.bf16.msra.mxu0 %v804
    %836 = vmatprep.subr.bf16.mxu0 %v803
    %837 = vmatpush1.bf16.msra.mxu0 %v802
    %838 = vmatprep.subr.bf16.mxu0 %v801
    %839 = vmatpush1.bf16.msra.mxu0 %v800
    %840 = vmatprep.subr.bf16.mxu0 %v799
    %841 = vmatpush1.bf16.msra.mxu0 %v798
    %842 = vmatprep.subr.bf16.mxu0 0
    %843 = vmatpush2.bf16.msra.mxu0 0
    %844 = vmatprep.subr.bf16.mxu0 0
    %845 = vmatpush2.bf16.msra.mxu0 0
    %846 = vmatprep.subr.bf16.mxu0 0
    %847 = vmatpush2.bf16.msra.mxu0 0
    %848 = vmatprep.subr.bf16.mxu0 0
    %849 = vmatpush2.bf16.msra.mxu0 0
    %850 = vmatprep.subr.bf16.mxu0 0
    %851 = vmatpush2.bf16.msra.mxu0 0
    %852 = vmatprep.subr.bf16.mxu0 0
    %853 = vmatpush2.bf16.msra.mxu0 0
    %854 = vmatprep.subr.bf16.mxu0 0
    %855 = vmatpush2.bf16.msra.mxu0 0
    %856 = vmatprep.subr.bf16.mxu0 0
    %857 = vmatpush2.bf16.msra.mxu0 0
    %858 = vmatprep.mubr.bf16.mxu0 0
    %859 = vmatmul.mubr.bf16.gmra.mxu0 %v452
    %v860 = vpop.f32.mrf.mxu0
    %v861 = vadd.f32 %v819, %v860
    %v862 = vpop.f32.mrf.mxu0
    %v863 = vadd.f32 %v823, %v862
    %v864 = vpop.f32.mrf.mxu0
    %v865 = vadd.f32 %v819, %v864
    %v866 = vpop.f32.mrf.mxu0
    %v867 = vadd.f32 %v823, %v866
    %868 = vmatprep.mubr.bf16.mxu0 0
    %869 = vmatmul.mubr.bf16.gmra.mxu0 %v453
    %v870 = vpop.f32.mrf.mxu0
    %v871 = vadd.f32 %v819, %v870
    %v872 = vpop.f32.mrf.mxu0
    %v873 = vadd.f32 %v823, %v872
    %v874 = vpop.f32.mrf.mxu0
    %v875 = vadd.f32 %v819, %v874
    %v876 = vpop.f32.mrf.mxu0
    %v877 = vadd.f32 %v823, %v876
    %878 = vmatprep.mubr.bf16.mxu0 0
    %879 = vmatmul.mubr.bf16.gmra.mxu0 %v454
    %v880 = vpop.f32.mrf.mxu0
    %v881 = vadd.f32 %v819, %v880
    %v882 = vpop.f32.mrf.mxu0
    %v883 = vadd.f32 %v823, %v882
    %v884 = vpop.f32.mrf.mxu0
    %v885 = vadd.f32 %v819, %v884
    %v886 = vpop.f32.mrf.mxu0
    %v887 = vadd.f32 %v823, %v886
    %888 = vmatprep.mubr.bf16.mxu0 0
    %889 = vmatmul.mubr.bf16.gmra.mxu0 %v455
    %v890 = vpop.f32.mrf.mxu0
    %v891 = vadd.f32 %v819, %v890
    %v892 = vpop.f32.mrf.mxu0
    %v893 = vadd.f32 %v823, %v892
    %v894 = vpop.f32.mrf.mxu0
    %v895 = vadd.f32 %v819, %v894
    %v896 = vpop.f32.mrf.mxu0
    %v897 = vadd.f32 %v823, %v896
    %898 = vmatprep.mubr.bf16.mxu0 0
    %899 = vmatmul.mubr.bf16.gmra.mxu0 %v456
    %v900 = vpop.f32.mrf.mxu0
    %v901 = vadd.f32 %v819, %v900
    %v902 = vpop.f32.mrf.mxu0
    %v903 = vadd.f32 %v823, %v902
    %v904 = vpop.f32.mrf.mxu0
    %v905 = vadd.f32 %v819, %v904
    %v906 = vpop.f32.mrf.mxu0
    %v907 = vadd.f32 %v823, %v906
    %908 = vmatprep.mubr.bf16.mxu0 0
    %909 = vmatmul.mubr.bf16.gmra.mxu0 %v457
    %v910 = vpop.f32.mrf.mxu0
    %v911 = vadd.f32 %v819, %v910
    %v912 = vpop.f32.mrf.mxu0
    %v913 = vadd.f32 %v823, %v912
    %v914 = vpop.f32.mrf.mxu0
    %v915 = vadd.f32 %v819, %v914
    %v916 = vpop.f32.mrf.mxu0
    %v917 = vadd.f32 %v823, %v916
    %918 = vmatprep.mubr.bf16.mxu0 0
    %919 = vmatmul.mubr.bf16.gmra.mxu0 %v458
    %v920 = vpop.f32.mrf.mxu0
    %v921 = vadd.f32 %v819, %v920
    %v922 = vpop.f32.mrf.mxu0
    %v923 = vadd.f32 %v823, %v922
    %v924 = vpop.f32.mrf.mxu0
    %v925 = vadd.f32 %v819, %v924
    %v926 = vpop.f32.mrf.mxu0
    %v927 = vadd.f32 %v823, %v926
    %928 = vmatprep.mubr.bf16.mxu0 0
    %929 = vmatmul.mubr.bf16.gmra.mxu0 %v459
    %v930 = vpop.f32.mrf.mxu0
    %v931 = vadd.f32 %v819, %v930
    %v932 = vpop.f32.mrf.mxu0
    %v933 = vadd.f32 %v823, %v932
    %v934 = vpop.f32.mrf.mxu0
    %v935 = vadd.f32 %v819, %v934
    %v936 = vpop.f32.mrf.mxu0
    %v937 = vadd.f32 %v823, %v936
    %938 = vdwg.mxu0
    %v939 = vld [vmem:[#allocation12] sm:$0xff]
    %v940 = vld [vmem:[#allocation12 + $0x8] sm:$0xff]
    %v941 = vld [vmem:[#allocation12 + $0x10] sm:$0xff]
    %v942 = vld [vmem:[#allocation12 + $0x18] sm:$0xff]
    %v943 = vld [vmem:[#allocation12 + $0x20] sm:$0xff]
    %v944 = vld [vmem:[#allocation12 + $0x28] sm:$0xff]
    %v945 = vld [vmem:[#allocation12 + $0x30] sm:$0xff]
    %v946 = vld [vmem:[#allocation12 + $0x38] sm:$0xff]
    %v947 = vld [vmem:[#allocation12 + $0x40] sm:$0xff]
    %v948 = vld [vmem:[#allocation12 + $0x48] sm:$0xff]
    %v949 = vld [vmem:[#allocation12 + $0x50] sm:$0xff]
    %v950 = vld [vmem:[#allocation12 + $0x58] sm:$0xff]
    %v951 = vld [vmem:[#allocation12 + $0x60] sm:$0xff]
    %v952 = vld [vmem:[#allocation12 + $0x68] sm:$0xff]
    %v953 = vld [vmem:[#allocation12 + $0x70] sm:$0xff]
    %v954 = vld [vmem:[#allocation12 + $0x78] sm:$0xff]
    %v971 = vunpack.c.l.b16 %v939
    %v972 = vunpack.c.h.b16 %v939
    %v973 = vunpack.c.l.b16 %v940
    %v974 = vunpack.c.h.b16 %v940
    %v975 = vunpack.c.l.b16 %v941
    %v976 = vunpack.c.h.b16 %v941
    %v977 = vunpack.c.l.b16 %v942
    %v978 = vunpack.c.h.b16 %v942
    %v979 = vunpack.c.l.b16 %v943
    %v980 = vunpack.c.h.b16 %v943
    %v981 = vunpack.c.l.b16 %v944
    %v982 = vunpack.c.h.b16 %v944
    %v983 = vunpack.c.l.b16 %v945
    %v984 = vunpack.c.h.b16 %v945
    %v985 = vunpack.c.l.b16 %v946
    %v986 = vunpack.c.h.b16 %v946
    %v987 = vunpack.c.l.b16 %v947
    %v988 = vunpack.c.h.b16 %v947
    %v989 = vunpack.c.l.b16 %v948
    %v990 = vunpack.c.h.b16 %v948
    %v991 = vunpack.c.l.b16 %v949
    %v992 = vunpack.c.h.b16 %v949
    %v993 = vunpack.c.l.b16 %v950
    %v994 = vunpack.c.h.b16 %v950
    %v995 = vunpack.c.l.b16 %v951
    %v996 = vunpack.c.h.b16 %v951
    %v997 = vunpack.c.l.b16 %v952
    %v998 = vunpack.c.h.b16 %v952
    %v999 = vunpack.c.l.b16 %v953
    %v1000 = vunpack.c.h.b16 %v953
    %v1001 = vunpack.c.l.b16 %v954
    %v1002 = vunpack.c.h.b16 %v954
    %v1003 = vpack.c.b16 %v973, %v971
    %v1004 = vpack.c.b16 %v974, %v972
    %v1005 = vpack.c.b16 %v977, %v975
    %v1006 = vpack.c.b16 %v978, %v976
    %v1007 = vpack.c.b16 %v981, %v979
    %v1008 = vpack.c.b16 %v982, %v980
    %v1009 = vpack.c.b16 %v985, %v983
    %v1010 = vpack.c.b16 %v986, %v984
    %v1011 = vpack.c.b16 %v989, %v987
    %v1012 = vpack.c.b16 %v990, %v988
    %v1013 = vpack.c.b16 %v993, %v991
    %v1014 = vpack.c.b16 %v994, %v992
    %v1015 = vpack.c.b16 %v997, %v995
    %v1016 = vpack.c.b16 %v998, %v996
    %v1017 = vpack.c.b16 %v1001, %v999
    %v1018 = vpack.c.b16 %v1002, %v1000
    %1035 = vmatprep.subr.bf16.mxu0 %v1018
    %1036 = vmatpush1.bf16.msra.mxu0 %v1017
    %1037 = vmatprep.subr.bf16.mxu0 %v1016
    %1038 = vmatpush1.bf16.msra.mxu0 %v1015
    %1039 = vmatprep.subr.bf16.mxu0 %v1014
    %1040 = vmatpush1.bf16.msra.mxu0 %v1013
    %1041 = vmatprep.subr.bf16.mxu0 %v1012
    %1042 = vmatpush1.bf16.msra.mxu0 %v1011
    %1043 = vmatprep.subr.bf16.mxu0 %v1010
    %1044 = vmatpush1.bf16.msra.mxu0 %v1009
    %1045 = vmatprep.subr.bf16.mxu0 %v1008
    %1046 = vmatpush1.bf16.msra.mxu0 %v1007
    %1047 = vmatprep.subr.bf16.mxu0 %v1006
    %1048 = vmatpush1.bf16.msra.mxu0 %v1005
    %1049 = vmatprep.subr.bf16.mxu0 %v1004
    %1050 = vmatpush1.bf16.msra.mxu0 %v1003
    %1051 = vmatprep.subr.bf16.mxu0 0
    %1052 = vmatpush2.bf16.msra.mxu0 0
    %1053 = vmatprep.subr.bf16.mxu0 0
    %1054 = vmatpush2.bf16.msra.mxu0 0
    %1055 = vmatprep.subr.bf16.mxu0 0
    %1056 = vmatpush2.bf16.msra.mxu0 0
    %1057 = vmatprep.subr.bf16.mxu0 0
    %1058 = vmatpush2.bf16.msra.mxu0 0
    %1059 = vmatprep.subr.bf16.mxu0 0
    %1060 = vmatpush2.bf16.msra.mxu0 0
    %1061 = vmatprep.subr.bf16.mxu0 0
    %1062 = vmatpush2.bf16.msra.mxu0 0
    %1063 = vmatprep.subr.bf16.mxu0 0
    %1064 = vmatpush2.bf16.msra.mxu0 0
    %1065 = vmatprep.subr.bf16.mxu0 0
    %1066 = vmatpush2.bf16.msra.mxu0 0
    %1067 = vmatprep.mubr.bf16.mxu0 0
    %1068 = vmatmul.mubr.bf16.gmra.mxu0 %v581
    %v1069 = vpop.f32.mrf.mxu0
    %v1070 = vadd.f32 0.0, %v1069
    %v1071 = vpop.f32.mrf.mxu0
    %v1072 = vadd.f32 0.0, %v1071
    %v1073 = vpop.f32.mrf.mxu0
    %v1074 = vadd.f32 0.0, %v1073
    %v1075 = vpop.f32.mrf.mxu0
    %v1076 = vadd.f32 0.0, %v1075
    %1077 = vmatprep.mubr.bf16.mxu0 0
    %1078 = vmatmul.mubr.bf16.gmra.mxu0 %v582
    %v1079 = vpop.f32.mrf.mxu0
    %v1080 = vadd.f32 0.0, %v1079
    %v1081 = vpop.f32.mrf.mxu0
    %v1082 = vadd.f32 0.0, %v1081
    %v1083 = vpop.f32.mrf.mxu0
    %v1084 = vadd.f32 0.0, %v1083
    %v1085 = vpop.f32.mrf.mxu0
    %v1086 = vadd.f32 0.0, %v1085
    %1087 = vmatprep.mubr.bf16.mxu0 0
    %1088 = vmatmul.mubr.bf16.gmra.mxu0 %v583
    %v1089 = vpop.f32.mrf.mxu0
    %v1090 = vadd.f32 0.0, %v1089
    %v1091 = vpop.f32.mrf.mxu0
    %v1092 = vadd.f32 0.0, %v1091
    %v1093 = vpop.f32.mrf.mxu0
    %v1094 = vadd.f32 0.0, %v1093
    %v1095 = vpop.f32.mrf.mxu0
    %v1096 = vadd.f32 0.0, %v1095
    %1097 = vmatprep.mubr.bf16.mxu0 0
    %1098 = vmatmul.mubr.bf16.gmra.mxu0 %v584
    %v1099 = vpop.f32.mrf.mxu0
    %v1100 = vadd.f32 0.0, %v1099
    %v1101 = vpop.f32.mrf.mxu0
    %v1102 = vadd.f32 0.0, %v1101
    %v1103 = vpop.f32.mrf.mxu0
    %v1104 = vadd.f32 0.0, %v1103
    %v1105 = vpop.f32.mrf.mxu0
    %v1106 = vadd.f32 0.0, %v1105
    %1107 = vmatprep.mubr.bf16.mxu0 0
    %1108 = vmatmul.mubr.bf16.gmra.mxu0 %v585
    %v1109 = vpop.f32.mrf.mxu0
    %v1110 = vadd.f32 0.0, %v1109
    %v1111 = vpop.f32.mrf.mxu0
    %v1112 = vadd.f32 0.0, %v1111
    %v1113 = vpop.f32.mrf.mxu0
    %v1114 = vadd.f32 0.0, %v1113
    %v1115 = vpop.f32.mrf.mxu0
    %v1116 = vadd.f32 0.0, %v1115
    %1117 = vmatprep.mubr.bf16.mxu0 0
    %1118 = vmatmul.mubr.bf16.gmra.mxu0 %v586
    %v1119 = vpop.f32.mrf.mxu0
    %v1120 = vadd.f32 0.0, %v1119
    %v1121 = vpop.f32.mrf.mxu0
    %v1122 = vadd.f32 0.0, %v1121
    %v1123 = vpop.f32.mrf.mxu0
    %v1124 = vadd.f32 0.0, %v1123
    %v1125 = vpop.f32.mrf.mxu0
    %v1126 = vadd.f32 0.0, %v1125
    %1127 = vmatprep.mubr.bf16.mxu0 0
    %1128 = vmatmul.mubr.bf16.gmra.mxu0 %v587
    %v1129 = vpop.f32.mrf.mxu0
    %v1130 = vadd.f32 0.0, %v1129
    %v1131 = vpop.f32.mrf.mxu0
    %v1132 = vadd.f32 0.0, %v1131
    %v1133 = vpop.f32.mrf.mxu0
    %v1134 = vadd.f32 0.0, %v1133
    %v1135 = vpop.f32.mrf.mxu0
    %v1136 = vadd.f32 0.0, %v1135
    %1137 = vmatprep.mubr.bf16.mxu0 0
    %1138 = vmatmul.mubr.bf16.gmra.mxu0 %v588
    %v1139 = vpop.f32.mrf.mxu0
    %v1140 = vadd.f32 0.0, %v1139
    %v1141 = vpop.f32.mrf.mxu0
    %v1142 = vadd.f32 0.0, %v1141
    %v1143 = vpop.f32.mrf.mxu0
    %v1144 = vadd.f32 0.0, %v1143
    %v1145 = vpop.f32.mrf.mxu0
    %v1146 = vadd.f32 0.0, %v1145
    %1147 = vdwg.mxu0
    %v1148 = vadd.f32 %v861, %v1070
    %v1149 = vadd.f32 %v863, %v1072
    %v1150 = vadd.f32 %v865, %v1074
    %v1151 = vadd.f32 %v867, %v1076
    %v1152 = vadd.f32 %v871, %v1080
    %v1153 = vadd.f32 %v873, %v1082
    %v1154 = vadd.f32 %v875, %v1084
    %v1155 = vadd.f32 %v877, %v1086
    %v1156 = vadd.f32 %v881, %v1090
    %v1157 = vadd.f32 %v883, %v1092
    %v1158 = vadd.f32 %v885, %v1094
    %v1159 = vadd.f32 %v887, %v1096
    %v1160 = vadd.f32 %v891, %v1100
    %v1161 = vadd.f32 %v893, %v1102
    %v1162 = vadd.f32 %v895, %v1104
    %v1163 = vadd.f32 %v897, %v1106
    %v1164 = vadd.f32 %v901, %v1110
    %v1165 = vadd.f32 %v903, %v1112
    %v1166 = vadd.f32 %v905, %v1114
    %v1167 = vadd.f32 %v907, %v1116
    %v1168 = vadd.f32 %v911, %v1120
    %v1169 = vadd.f32 %v913, %v1122
    %v1170 = vadd.f32 %v915, %v1124
    %v1171 = vadd.f32 %v917, %v1126
    %v1172 = vadd.f32 %v921, %v1130
    %v1173 = vadd.f32 %v923, %v1132
    %v1174 = vadd.f32 %v925, %v1134
    %v1175 = vadd.f32 %v927, %v1136
    %v1176 = vadd.f32 %v931, %v1140
    %v1177 = vadd.f32 %v933, %v1142
    %v1178 = vadd.f32 %v935, %v1144
    %v1179 = vadd.f32 %v937, %v1146
    %v1180 = vld [vmem:[%s8] sm:$0x3]
    %v1182 = vlaneseq
    %v1183 = vshrl.u32 %v1182, 7
    %v1184 = vsub.s32 0, %v1183
    %v1185 = vrot.slane %v1180, %v1184
    %v1186 = vlaneseq
    %v1187 = vshrl.u32 %v1186, 7
    %v1188 = vsub.s32 1, %v1187
    %v1189 = vrot.slane %v1180, %v1188
    %v1192 = vadd.f32 %v1148, %v1185
    %v1193 = vadd.f32 %v1149, %v1189
    %v1194 = vadd.f32 %v1150, %v1185
    %v1195 = vadd.f32 %v1151, %v1189
    %v1196 = vadd.f32 %v1152, %v1185
    %v1197 = vadd.f32 %v1153, %v1189
    %v1198 = vadd.f32 %v1154, %v1185
    %v1199 = vadd.f32 %v1155, %v1189
    %v1200 = vadd.f32 %v1156, %v1185
    %v1201 = vadd.f32 %v1157, %v1189
    %v1202 = vadd.f32 %v1158, %v1185
    %v1203 = vadd.f32 %v1159, %v1189
    %v1204 = vadd.f32 %v1160, %v1185
    %v1205 = vadd.f32 %v1161, %v1189
    %v1206 = vadd.f32 %v1162, %v1185
    %v1207 = vadd.f32 %v1163, %v1189
    %v1208 = vadd.f32 %v1164, %v1185
    %v1209 = vadd.f32 %v1165, %v1189
    %v1210 = vadd.f32 %v1166, %v1185
    %v1211 = vadd.f32 %v1167, %v1189
    %v1212 = vadd.f32 %v1168, %v1185
    %v1213 = vadd.f32 %v1169, %v1189
    %v1214 = vadd.f32 %v1170, %v1185
    %v1215 = vadd.f32 %v1171, %v1189
    %v1216 = vadd.f32 %v1172, %v1185
    %v1217 = vadd.f32 %v1173, %v1189
    %v1218 = vadd.f32 %v1174, %v1185
    %v1219 = vadd.f32 %v1175, %v1189
    %v1220 = vadd.f32 %v1176, %v1185
    %v1221 = vadd.f32 %v1177, %v1189
    %v1222 = vadd.f32 %v1178, %v1185
    %v1223 = vadd.f32 %v1179, %v1189
    %v1224 = vmax.f32 %v1192, 0.0
    %v1225 = vmax.f32 %v1193, 0.0
    %v1226 = vmax.f32 %v1194, 0.0
    %v1227 = vmax.f32 %v1195, 0.0
    %v1228 = vmax.f32 %v1196, 0.0
    %v1229 = vmax.f32 %v1197, 0.0
    %v1230 = vmax.f32 %v1198, 0.0
    %v1231 = vmax.f32 %v1199, 0.0
    %v1232 = vmax.f32 %v1200, 0.0
    %v1233 = vmax.f32 %v1201, 0.0
    %v1234 = vmax.f32 %v1202, 0.0
    %v1235 = vmax.f32 %v1203, 0.0
    %v1236 = vmax.f32 %v1204, 0.0
    %v1237 = vmax.f32 %v1205, 0.0
    %v1238 = vmax.f32 %v1206, 0.0
    %v1239 = vmax.f32 %v1207, 0.0
    %v1240 = vmax.f32 %v1208, 0.0
    %v1241 = vmax.f32 %v1209, 0.0
    %v1242 = vmax.f32 %v1210, 0.0
    %v1243 = vmax.f32 %v1211, 0.0
    %v1244 = vmax.f32 %v1212, 0.0
    %v1245 = vmax.f32 %v1213, 0.0
    %v1246 = vmax.f32 %v1214, 0.0
    %v1247 = vmax.f32 %v1215, 0.0
    %v1248 = vmax.f32 %v1216, 0.0
    %v1249 = vmax.f32 %v1217, 0.0
    %v1250 = vmax.f32 %v1218, 0.0
    %v1251 = vmax.f32 %v1219, 0.0
    %v1252 = vmax.f32 %v1220, 0.0
    %v1253 = vmax.f32 %v1221, 0.0
    %v1254 = vmax.f32 %v1222, 0.0
    %v1255 = vmax.f32 %v1223, 0.0
    %v1256 = vpack.c.bf16 %v1226, %v1224
    %v1257 = vpack.c.bf16 %v1227, %v1225
    %v1258 = vpack.c.bf16 %v1230, %v1228
    %v1259 = vpack.c.bf16 %v1231, %v1229
    %v1260 = vpack.c.bf16 %v1234, %v1232
    %v1261 = vpack.c.bf16 %v1235, %v1233
    %v1262 = vpack.c.bf16 %v1238, %v1236
    %v1263 = vpack.c.bf16 %v1239, %v1237
    %v1264 = vpack.c.bf16 %v1242, %v1240
    %v1265 = vpack.c.bf16 %v1243, %v1241
    %v1266 = vpack.c.bf16 %v1246, %v1244
    %v1267 = vpack.c.bf16 %v1247, %v1245
    %v1268 = vpack.c.bf16 %v1250, %v1248
    %v1269 = vpack.c.bf16 %v1251, %v1249
    %v1270 = vpack.c.bf16 %v1254, %v1252
    %v1271 = vpack.c.bf16 %v1255, %v1253
    %v1272 = vld [vmem:[#allocation14] sm:$0xf]
    %v1273 = vld [vmem:[#allocation14 + $0x4] sm:$0xf]
    %v1274 = vld [vmem:[#allocation14 + $0x8] sm:$0xf]
    %v1275 = vld [vmem:[#allocation14 + $0xc] sm:$0xf]
    %v1276 = vld [vmem:[#allocation14 + $0x10] sm:$0xf]
    %v1277 = vld [vmem:[#allocation14 + $0x14] sm:$0xf]
    %v1278 = vld [vmem:[#allocation14 + $0x18] sm:$0xf]
    %v1279 = vld [vmem:[#allocation14 + $0x1c] sm:$0xf]
    %v1280 = vld [vmem:[#allocation14 + $0x20] sm:$0xf]
    %v1281 = vld [vmem:[#allocation14 + $0x24] sm:$0xf]
    %v1282 = vld [vmem:[#allocation14 + $0x28] sm:$0xf]
    %v1283 = vld [vmem:[#allocation14 + $0x2c] sm:$0xf]
    %v1284 = vld [vmem:[#allocation14 + $0x30] sm:$0xf]
    %v1285 = vld [vmem:[#allocation14 + $0x34] sm:$0xf]
    %v1286 = vld [vmem:[#allocation14 + $0x38] sm:$0xf]
    %v1287 = vld [vmem:[#allocation14 + $0x3c] sm:$0xf]
    %v1288 = vld [vmem:[#allocation14 + $0x40] sm:$0xf]
    %v1289 = vld [vmem:[#allocation14 + $0x44] sm:$0xf]
    %v1290 = vld [vmem:[#allocation14 + $0x48] sm:$0xf]
    %v1291 = vld [vmem:[#allocation14 + $0x4c] sm:$0xf]
    %v1292 = vld [vmem:[#allocation14 + $0x50] sm:$0xf]
    %v1293 = vld [vmem:[#allocation14 + $0x54] sm:$0xf]
    %v1294 = vld [vmem:[#allocation14 + $0x58] sm:$0xf]
    %v1295 = vld [vmem:[#allocation14 + $0x5c] sm:$0xf]
    %v1296 = vld [vmem:[#allocation14 + $0x60] sm:$0xf]
    %v1297 = vld [vmem:[#allocation14 + $0x64] sm:$0xf]
    %v1298 = vld [vmem:[#allocation14 + $0x68] sm:$0xf]
    %v1299 = vld [vmem:[#allocation14 + $0x6c] sm:$0xf]
    %v1300 = vld [vmem:[#allocation14 + $0x70] sm:$0xf]
    %v1301 = vld [vmem:[#allocation14 + $0x74] sm:$0xf]
    %v1302 = vld [vmem:[#allocation14 + $0x78] sm:$0xf]
    %v1303 = vld [vmem:[#allocation14 + $0x7c] sm:$0xf]
    %v1304 = vld [vmem:[%s10] sm:$0x1]
    %v1306 = vlaneseq
    %v1307 = vshrl.u32 %v1306, 7
    %v1308 = vsub.s32 0, %v1307
    %v1309 = vrot.slane %v1304, %v1308
    %v1343 = vunpack.c.l.b16 %v1272
    %v1344 = vunpack.c.l.b16 %v1273
    %v1345 = vunpack.c.l.b16 %v1274
    %v1346 = vunpack.c.l.b16 %v1275
    %v1347 = vunpack.c.l.b16 %v1276
    %v1348 = vunpack.c.l.b16 %v1277
    %v1349 = vunpack.c.l.b16 %v1278
    %v1350 = vunpack.c.l.b16 %v1279
    %v1351 = vunpack.c.l.b16 %v1280
    %v1352 = vunpack.c.l.b16 %v1281
    %v1353 = vunpack.c.l.b16 %v1282
    %v1354 = vunpack.c.l.b16 %v1283
    %v1355 = vunpack.c.l.b16 %v1284
    %v1356 = vunpack.c.l.b16 %v1285
    %v1357 = vunpack.c.l.b16 %v1286
    %v1358 = vunpack.c.l.b16 %v1287
    %v1359 = vunpack.c.l.b16 %v1288
    %v1360 = vunpack.c.l.b16 %v1289
    %v1361 = vunpack.c.l.b16 %v1290
    %v1362 = vunpack.c.l.b16 %v1291
    %v1363 = vunpack.c.l.b16 %v1292
    %v1364 = vunpack.c.l.b16 %v1293
    %v1365 = vunpack.c.l.b16 %v1294
    %v1366 = vunpack.c.l.b16 %v1295
    %v1367 = vunpack.c.l.b16 %v1296
    %v1368 = vunpack.c.l.b16 %v1297
    %v1369 = vunpack.c.l.b16 %v1298
    %v1370 = vunpack.c.l.b16 %v1299
    %v1371 = vunpack.c.l.b16 %v1300
    %v1372 = vunpack.c.l.b16 %v1301
    %v1373 = vunpack.c.l.b16 %v1302
    %v1374 = vunpack.c.l.b16 %v1303
    %v1375 = vpack.c.b16 %v1344, %v1343
    %v1376 = vpack.c.b16 %v1346, %v1345
    %v1377 = vpack.c.b16 %v1348, %v1347
    %v1378 = vpack.c.b16 %v1350, %v1349
    %v1379 = vpack.c.b16 %v1352, %v1351
    %v1380 = vpack.c.b16 %v1354, %v1353
    %v1381 = vpack.c.b16 %v1356, %v1355
    %v1382 = vpack.c.b16 %v1358, %v1357
    %v1383 = vpack.c.b16 %v1360, %v1359
    %v1384 = vpack.c.b16 %v1362, %v1361
    %v1385 = vpack.c.b16 %v1364, %v1363
    %v1386 = vpack.c.b16 %v1366, %v1365
    %v1387 = vpack.c.b16 %v1368, %v1367
    %v1388 = vpack.c.b16 %v1370, %v1369
    %v1389 = vpack.c.b16 %v1372, %v1371
    %v1390 = vpack.c.b16 %v1374, %v1373
    %1407 = vmatprep.subr.bf16.mxu0 0
    %1408 = vmatpush1.bf16.msra.mxu0 %v1382
    %1409 = vmatprep.subr.bf16.mxu0 0
    %1410 = vmatpush1.bf16.msra.mxu0 %v1381
    %1411 = vmatprep.subr.bf16.mxu0 0
    %1412 = vmatpush1.bf16.msra.mxu0 %v1380
    %1413 = vmatprep.subr.bf16.mxu0 0
    %1414 = vmatpush1.bf16.msra.mxu0 %v1379
    %1415 = vmatprep.subr.bf16.mxu0 0
    %1416 = vmatpush1.bf16.msra.mxu0 %v1378
    %1417 = vmatprep.subr.bf16.mxu0 0
    %1418 = vmatpush1.bf16.msra.mxu0 %v1377
    %1419 = vmatprep.subr.bf16.mxu0 0
    %1420 = vmatpush1.bf16.msra.mxu0 %v1376
    %1421 = vmatprep.subr.bf16.mxu0 0
    %1422 = vmatpush1.bf16.msra.mxu0 %v1375
    %1423 = vmatprep.subr.bf16.mxu0 0
    %1424 = vmatpush2.bf16.msra.mxu0 %v1390
    %1425 = vmatprep.subr.bf16.mxu0 0
    %1426 = vmatpush2.bf16.msra.mxu0 %v1389
    %1427 = vmatprep.subr.bf16.mxu0 0
    %1428 = vmatpush2.bf16.msra.mxu0 %v1388
    %1429 = vmatprep.subr.bf16.mxu0 0
    %1430 = vmatpush2.bf16.msra.mxu0 %v1387
    %1431 = vmatprep.subr.bf16.mxu0 0
    %1432 = vmatpush2.bf16.msra.mxu0 %v1386
    %1433 = vmatprep.subr.bf16.mxu0 0
    %1434 = vmatpush2.bf16.msra.mxu0 %v1385
    %1435 = vmatprep.subr.bf16.mxu0 0
    %1436 = vmatpush2.bf16.msra.mxu0 %v1384
    %1437 = vmatprep.subr.bf16.mxu0 0
    %1438 = vmatpush2.bf16.msra.mxu0 %v1383
    %1439 = vmatprep.mubr.bf16.mxu0 %v1257
    %1440 = vmatmul.mubr.bf16.gmra.mxu0 %v1256
    %v1441 = vpop.f32.mrf.mxu0
    %v1442 = vadd.f32 %v1309, %v1441
    %v1443 = vpop.f32.mrf.mxu0
    %v1444 = vpop.f32.mrf.mxu0
    %v1445 = vadd.f32 %v1309, %v1444
    %v1446 = vpop.f32.mrf.mxu0
    %1447 = vmatprep.mubr.bf16.mxu0 %v1259
    %1448 = vmatmul.mubr.bf16.gmra.mxu0 %v1258
    %v1449 = vpop.f32.mrf.mxu0
    %v1450 = vadd.f32 %v1309, %v1449
    %v1451 = vpop.f32.mrf.mxu0
    %v1452 = vpop.f32.mrf.mxu0
    %v1453 = vadd.f32 %v1309, %v1452
    %v1454 = vpop.f32.mrf.mxu0
    %1455 = vmatprep.mubr.bf16.mxu0 %v1261
    %1456 = vmatmul.mubr.bf16.gmra.mxu0 %v1260
    %v1457 = vpop.f32.mrf.mxu0
    %v1458 = vadd.f32 %v1309, %v1457
    %v1459 = vpop.f32.mrf.mxu0
    %v1460 = vpop.f32.mrf.mxu0
    %v1461 = vadd.f32 %v1309, %v1460
    %v1462 = vpop.f32.mrf.mxu0
    %1463 = vmatprep.mubr.bf16.mxu0 %v1263
    %1464 = vmatmul.mubr.bf16.gmra.mxu0 %v1262
    %v1465 = vpop.f32.mrf.mxu0
    %v1466 = vadd.f32 %v1309, %v1465
    %v1467 = vpop.f32.mrf.mxu0
    %v1468 = vpop.f32.mrf.mxu0
    %v1469 = vadd.f32 %v1309, %v1468
    %v1470 = vpop.f32.mrf.mxu0
    %1471 = vmatprep.mubr.bf16.mxu0 %v1265
    %1472 = vmatmul.mubr.bf16.gmra.mxu0 %v1264
    %v1473 = vpop.f32.mrf.mxu0
    %v1474 = vadd.f32 %v1309, %v1473
    %v1475 = vpop.f32.mrf.mxu0
    %v1476 = vpop.f32.mrf.mxu0
    %v1477 = vadd.f32 %v1309, %v1476
    %v1478 = vpop.f32.mrf.mxu0
    %1479 = vmatprep.mubr.bf16.mxu0 %v1267
    %1480 = vmatmul.mubr.bf16.gmra.mxu0 %v1266
    %v1481 = vpop.f32.mrf.mxu0
    %v1482 = vadd.f32 %v1309, %v1481
    %v1483 = vpop.f32.mrf.mxu0
    %v1484 = vpop.f32.mrf.mxu0
    %v1485 = vadd.f32 %v1309, %v1484
    %v1486 = vpop.f32.mrf.mxu0
    %1487 = vmatprep.mubr.bf16.mxu0 %v1269
    %1488 = vmatmul.mubr.bf16.gmra.mxu0 %v1268
    %v1489 = vpop.f32.mrf.mxu0
    %v1490 = vadd.f32 %v1309, %v1489
    %v1491 = vpop.f32.mrf.mxu0
    %v1492 = vpop.f32.mrf.mxu0
    %v1493 = vadd.f32 %v1309, %v1492
    %v1494 = vpop.f32.mrf.mxu0
    %1495 = vmatprep.mubr.bf16.mxu0 %v1271
    %1496 = vmatmul.mubr.bf16.gmra.mxu0 %v1270
    %v1497 = vpop.f32.mrf.mxu0
    %v1498 = vadd.f32 %v1309, %v1497
    %v1499 = vpop.f32.mrf.mxu0
    %v1500 = vpop.f32.mrf.mxu0
    %v1501 = vadd.f32 %v1309, %v1500
    %v1502 = vpop.f32.mrf.mxu0
    %1503 = vdwg.mxu0
    %v1504 = vmax.f32 %v1442, 0.0
    %v1505 = vmax.f32 %v1445, 0.0
    %v1506 = vmax.f32 %v1450, 0.0
    %v1507 = vmax.f32 %v1453, 0.0
    %v1508 = vmax.f32 %v1458, 0.0
    %v1509 = vmax.f32 %v1461, 0.0
    %v1510 = vmax.f32 %v1466, 0.0
    %v1511 = vmax.f32 %v1469, 0.0
    %v1512 = vmax.f32 %v1474, 0.0
    %v1513 = vmax.f32 %v1477, 0.0
    %v1514 = vmax.f32 %v1482, 0.0
    %v1515 = vmax.f32 %v1485, 0.0
    %v1516 = vmax.f32 %v1490, 0.0
    %v1517 = vmax.f32 %v1493, 0.0
    %v1518 = vmax.f32 %v1498, 0.0
    %v1519 = vmax.f32 %v1501, 0.0
    %v1520 = vld [vmem:[%s11] sm:$0x1]
    %v1522 = vlaneseq
    %v1523 = vshrl.u32 %v1522, 7
    %v1524 = vsub.s32 0, %v1523
    %v1525 = vrot.slane %v1520, %v1524
    %v1527 = vmul.f32 %v1504, %v1525
    %v1528 = vmul.f32 %v1505, %v1525
    %v1529 = vmul.f32 %v1506, %v1525
    %v1530 = vmul.f32 %v1507, %v1525
    %v1531 = vmul.f32 %v1508, %v1525
    %v1532 = vmul.f32 %v1509, %v1525
    %v1533 = vmul.f32 %v1510, %v1525
    %v1534 = vmul.f32 %v1511, %v1525
    %v1535 = vmul.f32 %v1512, %v1525
    %v1536 = vmul.f32 %v1513, %v1525
    %v1537 = vmul.f32 %v1514, %v1525
    %v1538 = vmul.f32 %v1515, %v1525
    %v1539 = vmul.f32 %v1516, %v1525
    %v1540 = vmul.f32 %v1517, %v1525
    %v1541 = vmul.f32 %v1518, %v1525
    %v1542 = vmul.f32 %v1519, %v1525
    %1543 = vadd.xlane.f32.xlu0 %v1527
    %v1544 = vpop.xlane.xlu0 %1543
    %1545 = vadd.xlane.f32.xlu0 %v1528
    %v1546 = vpop.xlane.xlu0 %1545
    %1547 = vadd.xlane.f32.xlu0 %v1529
    %v1548 = vpop.xlane.xlu0 %1547
    %1549 = vadd.xlane.f32.xlu0 %v1530
    %v1550 = vpop.xlane.xlu0 %1549
    %1551 = vadd.xlane.f32.xlu0 %v1531
    %v1552 = vpop.xlane.xlu0 %1551
    %1553 = vadd.xlane.f32.xlu0 %v1532
    %v1554 = vpop.xlane.xlu0 %1553
    %1555 = vadd.xlane.f32.xlu0 %v1533
    %v1556 = vpop.xlane.xlu0 %1555
    %1557 = vadd.xlane.f32.xlu0 %v1534
    %v1558 = vpop.xlane.xlu0 %1557
    %1559 = vadd.xlane.f32.xlu0 %v1535
    %v1560 = vpop.xlane.xlu0 %1559
    %1561 = vadd.xlane.f32.xlu0 %v1536
    %v1562 = vpop.xlane.xlu0 %1561
    %1563 = vadd.xlane.f32.xlu0 %v1537
    %v1564 = vpop.xlane.xlu0 %1563
    %1565 = vadd.xlane.f32.xlu0 %v1538
    %v1566 = vpop.xlane.xlu0 %1565
    %1567 = vadd.xlane.f32.xlu0 %v1539
    %v1568 = vpop.xlane.xlu0 %1567
    %1569 = vadd.xlane.f32.xlu0 %v1540
    %v1570 = vpop.xlane.xlu0 %1569
    %1571 = vadd.xlane.f32.xlu0 %v1541
    %v1572 = vpop.xlane.xlu0 %1571
    %1573 = vadd.xlane.f32.xlu0 %v1542
    %v1574 = vpop.xlane.xlu0 %1573
    %v1575 = vld [vmem:[#allocation2] sm:$0x1]
    %v1577 = vlaneseq
    %v1578 = vshrl.u32 %v1577, 7
    %v1579 = vsub.s32 0, %v1578
    %v1580 = vrot.slane %v1575, %v1579
    %v1582 = vadd.f32 %v1544, %v1580
    %v1583 = vadd.f32 %v1546, %v1580
    %v1584 = vadd.f32 %v1548, %v1580
    %v1585 = vadd.f32 %v1550, %v1580
    %v1586 = vadd.f32 %v1552, %v1580
    %v1587 = vadd.f32 %v1554, %v1580
    %v1588 = vadd.f32 %v1556, %v1580
    %v1589 = vadd.f32 %v1558, %v1580
    %v1590 = vadd.f32 %v1560, %v1580
    %v1591 = vadd.f32 %v1562, %v1580
    %v1592 = vadd.f32 %v1564, %v1580
    %v1593 = vadd.f32 %v1566, %v1580
    %v1594 = vadd.f32 %v1568, %v1580
    %v1595 = vadd.f32 %v1570, %v1580
    %v1596 = vadd.f32 %v1572, %v1580
    %v1597 = vadd.f32 %v1574, %v1580
    %v1598 = vxor.u32 %v1582, 2147483648
    %v1599 = vxor.u32 %v1583, 2147483648
    %v1600 = vxor.u32 %v1584, 2147483648
    %v1601 = vxor.u32 %v1585, 2147483648
    %v1602 = vxor.u32 %v1586, 2147483648
    %v1603 = vxor.u32 %v1587, 2147483648
    %v1604 = vxor.u32 %v1588, 2147483648
    %v1605 = vxor.u32 %v1589, 2147483648
    %v1606 = vxor.u32 %v1590, 2147483648
    %v1607 = vxor.u32 %v1591, 2147483648
    %v1608 = vxor.u32 %v1592, 2147483648
    %v1609 = vxor.u32 %v1593, 2147483648
    %v1610 = vxor.u32 %v1594, 2147483648
    %v1611 = vxor.u32 %v1595, 2147483648
    %v1612 = vxor.u32 %v1596, 2147483648
    %v1613 = vxor.u32 %v1597, 2147483648
    %v1614 = vmul.f32 %v1598, 1.442695
    %v1615 = vpow.pop %v1614
    %v1616 = vmul.f32 %v1599, 1.442695
    %v1617 = vpow.pop %v1616
    %v1618 = vmul.f32 %v1600, 1.442695
    %v1619 = vpow.pop %v1618
    %v1620 = vmul.f32 %v1601, 1.442695
    %v1621 = vpow.pop %v1620
    %v1622 = vmul.f32 %v1602, 1.442695
    %v1623 = vpow.pop %v1622
    %v1624 = vmul.f32 %v1603, 1.442695
    %v1625 = vpow.pop %v1624
    %v1626 = vmul.f32 %v1604, 1.442695
    %v1627 = vpow.pop %v1626
    %v1628 = vmul.f32 %v1605, 1.442695
    %v1629 = vpow.pop %v1628
    %v1630 = vmul.f32 %v1606, 1.442695
    %v1631 = vpow.pop %v1630
    %v1632 = vmul.f32 %v1607, 1.442695
    %v1633 = vpow.pop %v1632
    %v1634 = vmul.f32 %v1608, 1.442695
    %v1635 = vpow.pop %v1634
    %v1636 = vmul.f32 %v1609, 1.442695
    %v1637 = vpow.pop %v1636
    %v1638 = vmul.f32 %v1610, 1.442695
    %v1639 = vpow.pop %v1638
    %v1640 = vmul.f32 %v1611, 1.442695
    %v1641 = vpow.pop %v1640
    %v1642 = vmul.f32 %v1612, 1.442695
    %v1643 = vpow.pop %v1642
    %v1644 = vmul.f32 %v1613, 1.442695
    %v1645 = vpow.pop %v1644
    %v1646 = vadd.f32 %v1615, 1.0
    %v1647 = vadd.f32 %v1617, 1.0
    %v1648 = vadd.f32 %v1619, 1.0
    %v1649 = vadd.f32 %v1621, 1.0
    %v1650 = vadd.f32 %v1623, 1.0
    %v1651 = vadd.f32 %v1625, 1.0
    %v1652 = vadd.f32 %v1627, 1.0
    %v1653 = vadd.f32 %v1629, 1.0
    %v1654 = vadd.f32 %v1631, 1.0
    %v1655 = vadd.f32 %v1633, 1.0
    %v1656 = vadd.f32 %v1635, 1.0
    %v1657 = vadd.f32 %v1637, 1.0
    %v1658 = vadd.f32 %v1639, 1.0
    %v1659 = vadd.f32 %v1641, 1.0
    %v1660 = vadd.f32 %v1643, 1.0
    %v1661 = vadd.f32 %v1645, 1.0
    %v1662 = vrcp.pop %v1646
    %v1663 = vmul.f32 1.0, %v1662
    %v1664 = vrcp.pop %v1647
    %v1665 = vmul.f32 1.0, %v1664
    %v1666 = vrcp.pop %v1648
    %v1667 = vmul.f32 1.0, %v1666
    %v1668 = vrcp.pop %v1649
    %v1669 = vmul.f32 1.0, %v1668
    %v1670 = vrcp.pop %v1650
    %v1671 = vmul.f32 1.0, %v1670
    %v1672 = vrcp.pop %v1651
    %v1673 = vmul.f32 1.0, %v1672
    %v1674 = vrcp.pop %v1652
    %v1675 = vmul.f32 1.0, %v1674
    %v1676 = vrcp.pop %v1653
    %v1677 = vmul.f32 1.0, %v1676
    %v1678 = vrcp.pop %v1654
    %v1679 = vmul.f32 1.0, %v1678
    %v1680 = vrcp.pop %v1655
    %v1681 = vmul.f32 1.0, %v1680
    %v1682 = vrcp.pop %v1656
    %v1683 = vmul.f32 1.0, %v1682
    %v1684 = vrcp.pop %v1657
    %v1685 = vmul.f32 1.0, %v1684
    %v1686 = vrcp.pop %v1658
    %v1687 = vmul.f32 1.0, %v1686
    %v1688 = vrcp.pop %v1659
    %v1689 = vmul.f32 1.0, %v1688
    %v1690 = vrcp.pop %v1660
    %v1691 = vmul.f32 1.0, %v1690
    %v1692 = vrcp.pop %v1661
    %v1693 = vmul.f32 1.0, %v1692
    %1695 = vset.pattern.permute.xlu0 0
    %1696 = vperm.xlu0 %1695, %v1663
    %v1697 = vpop.permute.xlu0 %1696
    %1700 = vset.pattern.permute.xlu0 0
    %1701 = vperm.xlu0 %1700, %v1665
    %v1702 = vpop.permute.xlu0 %1701
    %1705 = vset.pattern.permute.xlu0 0
    %1706 = vperm.xlu0 %1705, %v1667
    %v1707 = vpop.permute.xlu0 %1706
    %1710 = vset.pattern.permute.xlu0 0
    %1711 = vperm.xlu0 %1710, %v1669
    %v1712 = vpop.permute.xlu0 %1711
    %1715 = vset.pattern.permute.xlu0 0
    %1716 = vperm.xlu0 %1715, %v1671
    %v1717 = vpop.permute.xlu0 %1716
    %1720 = vset.pattern.permute.xlu0 0
    %1721 = vperm.xlu0 %1720, %v1673
    %v1722 = vpop.permute.xlu0 %1721
    %1725 = vset.pattern.permute.xlu0 0
    %1726 = vperm.xlu0 %1725, %v1675
    %v1727 = vpop.permute.xlu0 %1726
    %1730 = vset.pattern.permute.xlu0 0
    %1731 = vperm.xlu0 %1730, %v1677
    %v1732 = vpop.permute.xlu0 %1731
    %1735 = vset.pattern.permute.xlu0 0
    %1736 = vperm.xlu0 %1735, %v1679
    %v1737 = vpop.permute.xlu0 %1736
    %1740 = vset.pattern.permute.xlu0 0
    %1741 = vperm.xlu0 %1740, %v1681
    %v1742 = vpop.permute.xlu0 %1741
    %1745 = vset.pattern.permute.xlu0 0
    %1746 = vperm.xlu0 %1745, %v1683
    %v1747 = vpop.permute.xlu0 %1746
    %1750 = vset.pattern.permute.xlu0 0
    %1751 = vperm.xlu0 %1750, %v1685
    %v1752 = vpop.permute.xlu0 %1751
    %1755 = vset.pattern.permute.xlu0 0
    %1756 = vperm.xlu0 %1755, %v1687
    %v1757 = vpop.permute.xlu0 %1756
    %1760 = vset.pattern.permute.xlu0 0
    %1761 = vperm.xlu0 %1760, %v1689
    %v1762 = vpop.permute.xlu0 %1761
    %1765 = vset.pattern.permute.xlu0 0
    %1766 = vperm.xlu0 %1765, %v1691
    %v1767 = vpop.permute.xlu0 %1766
    %1770 = vset.pattern.permute.xlu0 0
    %1771 = vperm.xlu0 %1770, %v1693
    %v1772 = vpop.permute.xlu0 %1771
    %v1774 = vmul.f32 %v1224, %v1697
    %v1775 = vmul.f32 %v1225, %v1697
    %v1776 = vmul.f32 %v1226, %v1702
    %v1777 = vmul.f32 %v1227, %v1702
    %v1778 = vmul.f32 %v1228, %v1707
    %v1779 = vmul.f32 %v1229, %v1707
    %v1780 = vmul.f32 %v1230, %v1712
    %v1781 = vmul.f32 %v1231, %v1712
    %v1782 = vmul.f32 %v1232, %v1717
    %v1783 = vmul.f32 %v1233, %v1717
    %v1784 = vmul.f32 %v1234, %v1722
    %v1785 = vmul.f32 %v1235, %v1722
    %v1786 = vmul.f32 %v1236, %v1727
    %v1787 = vmul.f32 %v1237, %v1727
    %v1788 = vmul.f32 %v1238, %v1732
    %v1789 = vmul.f32 %v1239, %v1732
    %v1790 = vmul.f32 %v1240, %v1737
    %v1791 = vmul.f32 %v1241, %v1737
    %v1792 = vmul.f32 %v1242, %v1742
    %v1793 = vmul.f32 %v1243, %v1742
    %v1794 = vmul.f32 %v1244, %v1747
    %v1795 = vmul.f32 %v1245, %v1747
    %v1796 = vmul.f32 %v1246, %v1752
    %v1797 = vmul.f32 %v1247, %v1752
    %v1798 = vmul.f32 %v1248, %v1757
    %v1799 = vmul.f32 %v1249, %v1757
    %v1800 = vmul.f32 %v1250, %v1762
    %v1801 = vmul.f32 %v1251, %v1762
    %v1802 = vmul.f32 %v1252, %v1767
    %v1803 = vmul.f32 %v1253, %v1767
    %v1804 = vmul.f32 %v1254, %v1772
    %v1805 = vmul.f32 %v1255, %v1772
    %v1806 = vpack.c.bf16 %v1776, %v1774
    %v1807 = vpack.c.bf16 %v1777, %v1775
    %v1808 = vpack.c.bf16 %v1780, %v1778
    %v1809 = vpack.c.bf16 %v1781, %v1779
    %v1810 = vpack.c.bf16 %v1784, %v1782
    %v1811 = vpack.c.bf16 %v1785, %v1783
    %v1812 = vpack.c.bf16 %v1788, %v1786
    %v1813 = vpack.c.bf16 %v1789, %v1787
    %v1814 = vpack.c.bf16 %v1792, %v1790
    %v1815 = vpack.c.bf16 %v1793, %v1791
    %v1816 = vpack.c.bf16 %v1796, %v1794
    %v1817 = vpack.c.bf16 %v1797, %v1795
    %v1818 = vpack.c.bf16 %v1800, %v1798
    %v1819 = vpack.c.bf16 %v1801, %v1799
    %v1820 = vpack.c.bf16 %v1804, %v1802
    %v1821 = vpack.c.bf16 %v1805, %v1803
    %v1822 = vld [vmem:[#allocation6] sm:$0xf]
    %1823 = vmatprep.subr.bf16.mxu0 %v1821
    %1824 = vmatpush1.bf16.msra.mxu0 %v1820
    %1825 = vmatprep.subr.bf16.mxu0 %v1819
    %1826 = vmatpush1.bf16.msra.mxu0 %v1818
    %1827 = vmatprep.subr.bf16.mxu0 %v1817
    %1828 = vmatpush1.bf16.msra.mxu0 %v1816
    %1829 = vmatprep.subr.bf16.mxu0 %v1815
    %1830 = vmatpush1.bf16.msra.mxu0 %v1814
    %1831 = vmatprep.subr.bf16.mxu0 %v1813
    %1832 = vmatpush1.bf16.msra.mxu0 %v1812
    %1833 = vmatprep.subr.bf16.mxu0 %v1811
    %1834 = vmatpush1.bf16.msra.mxu0 %v1810
    %1835 = vmatprep.subr.bf16.mxu0 %v1809
    %1836 = vmatpush1.bf16.msra.mxu0 %v1808
    %1837 = vmatprep.subr.bf16.mxu0 %v1807
    %1838 = vmatpush1.bf16.msra.mxu0 %v1806
    %1839 = vmatprep.subr.bf16.mxu0 0
    %1840 = vmatpush2.bf16.msra.mxu0 0
    %1841 = vmatprep.subr.bf16.mxu0 0
    %1842 = vmatpush2.bf16.msra.mxu0 0
    %1843 = vmatprep.subr.bf16.mxu0 0
    %1844 = vmatpush2.bf16.msra.mxu0 0
    %1845 = vmatprep.subr.bf16.mxu0 0
    %1846 = vmatpush2.bf16.msra.mxu0 0
    %1847 = vmatprep.subr.bf16.mxu0 0
    %1848 = vmatpush2.bf16.msra.mxu0 0
    %1849 = vmatprep.subr.bf16.mxu0 0
    %1850 = vmatpush2.bf16.msra.mxu0 0
    %1851 = vmatprep.subr.bf16.mxu0 0
    %1852 = vmatpush2.bf16.msra.mxu0 0
    %1853 = vmatprep.subr.bf16.mxu0 0
    %1854 = vmatpush2.bf16.msra.mxu0 0
    %1855 = vmatprep.mubr.bf16.mxu0 0
    %1856 = vmatmul.mubr.bf16.gmra.mxu0 %v1822
    %v1857 = vpop.f32.mrf.mxu0
    %v1858 = vadd.f32 0.0, %v1857
    %v1859 = vpop.f32.mrf.mxu0
    %v1860 = vadd.f32 0.0, %v1859
    %v1861 = vpop.f32.mrf.mxu0
    %v1862 = vpop.f32.mrf.mxu0
    %1863 = vdwg.mxu0
    %1864 = vst [vmem:[#allocation17] sm:$0xff] %v1858
    %1865 = vst [vmem:[#allocation17 + $0x8] sm:$0xff] %v1860
    %v1866 = vpack.c.bf16 %v1858, %v1858
    %v1867 = vpack.c.bf16 %v1860, %v1860
    %v1868 = vld [vmem:[#allocation15] sm:$0xf]
    %v1869 = vld [vmem:[#allocation15 + $0x4] sm:$0xf]
    %v1870 = vld [vmem:[#allocation15 + $0x8] sm:$0xf]
    %v1871 = vld [vmem:[#allocation15 + $0xc] sm:$0xf]
    %v1872 = vld [vmem:[#allocation15 + $0x10] sm:$0xf]
    %v1873 = vld [vmem:[#allocation15 + $0x14] sm:$0xf]
    %v1874 = vld [vmem:[#allocation15 + $0x18] sm:$0xf]
    %v1875 = vld [vmem:[#allocation15 + $0x1c] sm:$0xf]
    %v1876 = vld [vmem:[#allocation15 + $0x20] sm:$0xf]
    %v1877 = vld [vmem:[#allocation15 + $0x24] sm:$0xf]
    %v1878 = vld [vmem:[#allocation15 + $0x28] sm:$0xf]
    %v1879 = vld [vmem:[#allocation15 + $0x2c] sm:$0xf]
    %v1880 = vld [vmem:[#allocation15 + $0x30] sm:$0xf]
    %v1881 = vld [vmem:[#allocation15 + $0x34] sm:$0xf]
    %v1882 = vld [vmem:[#allocation15 + $0x38] sm:$0xf]
    %v1883 = vld [vmem:[#allocation15 + $0x3c] sm:$0xf]
    %v1884 = vld [vmem:[#allocation15 + $0x40] sm:$0xf]
    %v1885 = vld [vmem:[#allocation15 + $0x44] sm:$0xf]
    %v1886 = vld [vmem:[#allocation15 + $0x48] sm:$0xf]
    %v1887 = vld [vmem:[#allocation15 + $0x4c] sm:$0xf]
    %v1888 = vld [vmem:[#allocation15 + $0x50] sm:$0xf]
    %v1889 = vld [vmem:[#allocation15 + $0x54] sm:$0xf]
    %v1890 = vld [vmem:[#allocation15 + $0x58] sm:$0xf]
    %v1891 = vld [vmem:[#allocation15 + $0x5c] sm:$0xf]
    %v1892 = vld [vmem:[#allocation15 + $0x60] sm:$0xf]
    %v1893 = vld [vmem:[#allocation15 + $0x64] sm:$0xf]
    %v1894 = vld [vmem:[#allocation15 + $0x68] sm:$0xf]
    %v1895 = vld [vmem:[#allocation15 + $0x6c] sm:$0xf]
    %v1896 = vld [vmem:[#allocation15 + $0x70] sm:$0xf]
    %v1897 = vld [vmem:[#allocation15 + $0x74] sm:$0xf]
    %v1898 = vld [vmem:[#allocation15 + $0x78] sm:$0xf]
    %v1899 = vld [vmem:[#allocation15 + $0x7c] sm:$0xf]
    %v1900 = vld [vmem:[%s14] sm:$0x1]
    %v1902 = vlaneseq
    %v1903 = vshrl.u32 %v1902, 7
    %v1904 = vsub.s32 0, %v1903
    %v1905 = vrot.slane %v1900, %v1904
    %v1939 = vunpack.c.l.b16 %v1868
    %v1940 = vunpack.c.l.b16 %v1869
    %v1941 = vunpack.c.l.b16 %v1870
    %v1942 = vunpack.c.l.b16 %v1871
    %v1943 = vunpack.c.l.b16 %v1872
    %v1944 = vunpack.c.l.b16 %v1873
    %v1945 = vunpack.c.l.b16 %v1874
    %v1946 = vunpack.c.l.b16 %v1875
    %v1947 = vunpack.c.l.b16 %v1876
    %v1948 = vunpack.c.l.b16 %v1877
    %v1949 = vunpack.c.l.b16 %v1878
    %v1950 = vunpack.c.l.b16 %v1879
    %v1951 = vunpack.c.l.b16 %v1880
    %v1952 = vunpack.c.l.b16 %v1881
    %v1953 = vunpack.c.l.b16 %v1882
    %v1954 = vunpack.c.l.b16 %v1883
    %v1955 = vunpack.c.l.b16 %v1884
    %v1956 = vunpack.c.l.b16 %v1885
    %v1957 = vunpack.c.l.b16 %v1886
    %v1958 = vunpack.c.l.b16 %v1887
    %v1959 = vunpack.c.l.b16 %v1888
    %v1960 = vunpack.c.l.b16 %v1889
    %v1961 = vunpack.c.l.b16 %v1890
    %v1962 = vunpack.c.l.b16 %v1891
    %v1963 = vunpack.c.l.b16 %v1892
    %v1964 = vunpack.c.l.b16 %v1893
    %v1965 = vunpack.c.l.b16 %v1894
    %v1966 = vunpack.c.l.b16 %v1895
    %v1967 = vunpack.c.l.b16 %v1896
    %v1968 = vunpack.c.l.b16 %v1897
    %v1969 = vunpack.c.l.b16 %v1898
    %v1970 = vunpack.c.l.b16 %v1899
    %v1971 = vpack.c.b16 %v1940, %v1939
    %v1972 = vpack.c.b16 %v1942, %v1941
    %v1973 = vpack.c.b16 %v1944, %v1943
    %v1974 = vpack.c.b16 %v1946, %v1945
    %v1975 = vpack.c.b16 %v1948, %v1947
    %v1976 = vpack.c.b16 %v1950, %v1949
    %v1977 = vpack.c.b16 %v1952, %v1951
    %v1978 = vpack.c.b16 %v1954, %v1953
    %v1979 = vpack.c.b16 %v1956, %v1955
    %v1980 = vpack.c.b16 %v1958, %v1957
    %v1981 = vpack.c.b16 %v1960, %v1959
    %v1982 = vpack.c.b16 %v1962, %v1961
    %v1983 = vpack.c.b16 %v1964, %v1963
    %v1984 = vpack.c.b16 %v1966, %v1965
    %v1985 = vpack.c.b16 %v1968, %v1967
    %v1986 = vpack.c.b16 %v1970, %v1969
    %2003 = vmatprep.subr.bf16.mxu0 0
    %2004 = vmatpush1.bf16.msra.mxu0 %v1978
    %2005 = vmatprep.subr.bf16.mxu0 0
    %2006 = vmatpush1.bf16.msra.mxu0 %v1977
    %2007 = vmatprep.subr.bf16.mxu0 0
    %2008 = vmatpush1.bf16.msra.mxu0 %v1976
    %2009 = vmatprep.subr.bf16.mxu0 0
    %2010 = vmatpush1.bf16.msra.mxu0 %v1975
    %2011 = vmatprep.subr.bf16.mxu0 0
    %2012 = vmatpush1.bf16.msra.mxu0 %v1974
    %2013 = vmatprep.subr.bf16.mxu0 0
    %2014 = vmatpush1.bf16.msra.mxu0 %v1973
    %2015 = vmatprep.subr.bf16.mxu0 0
    %2016 = vmatpush1.bf16.msra.mxu0 %v1972
    %2017 = vmatprep.subr.bf16.mxu0 0
    %2018 = vmatpush1.bf16.msra.mxu0 %v1971
    %2019 = vmatprep.subr.bf16.mxu0 0
    %2020 = vmatpush2.bf16.msra.mxu0 %v1986
    %2021 = vmatprep.subr.bf16.mxu0 0
    %2022 = vmatpush2.bf16.msra.mxu0 %v1985
    %2023 = vmatprep.subr.bf16.mxu0 0
    %2024 = vmatpush2.bf16.msra.mxu0 %v1984
    %2025 = vmatprep.subr.bf16.mxu0 0
    %2026 = vmatpush2.bf16.msra.mxu0 %v1983
    %2027 = vmatprep.subr.bf16.mxu0 0
    %2028 = vmatpush2.bf16.msra.mxu0 %v1982
    %2029 = vmatprep.subr.bf16.mxu0 0
    %2030 = vmatpush2.bf16.msra.mxu0 %v1981
    %2031 = vmatprep.subr.bf16.mxu0 0
    %2032 = vmatpush2.bf16.msra.mxu0 %v1980
    %2033 = vmatprep.subr.bf16.mxu0 0
    %2034 = vmatpush2.bf16.msra.mxu0 %v1979
    %2035 = vmatprep.mubr.bf16.mxu0 %v1867
    %2036 = vmatmul.mubr.bf16.gmra.mxu0 %v1866
    %v2037 = vpop.f32.mrf.mxu0
    %v2038 = vadd.f32 %v1905, %v2037
    %v2039 = vpop.f32.mrf.mxu0
    %v2040 = vpop.f32.mrf.mxu0
    %v2041 = vpop.f32.mrf.mxu0
    %2042 = vdwg.mxu0
    %2043 = vst [vmem:[#allocation18] sm:$0xff] %v2038
    // Predicated region
    $region94: #{tpu_custom_call.1} parent=1 // pred_check
      _
    $region95: #{tpu_custom_call.1} parent=1 // pred_check_branch
      %2045 = sbr.rel (0) target = $region97
    $region96: #{tpu_custom_call.1} parent=1 // pred_region
      %s2047 = ssub.s32 256, 256
      %2048 = vsyncadd [#allocation5], %s2047
      %s2050 = sshll.u32 [#allocation17], 4
      %s2051 = int_to_ptr.vmem [resolvable:$true] %s2050
      %2053 = dma.vmem_to_hbm [thread:$0]  %s2051, 256, %s15, [#allocation5]
    $region97: #{tpu_custom_call.1} parent=1 // pred_fallthru
      _
    // Predicated region
    $region98: #{tpu_custom_call.1} parent=1 // pred_check
      _
    $region99: #{tpu_custom_call.1} parent=1 // pred_check_branch
      %2055 = sbr.rel (0) target = $region101
    $region100: #{tpu_custom_call.1} parent=1 // pred_region
      %s2057 = ssub.s32 128, 128
      %2058 = vsyncadd [#allocation19], %s2057
      %s2060 = sshll.u32 [#allocation18], 4
      %s2061 = int_to_ptr.vmem [resolvable:$true] %s2060
      %2063 = dma.vmem_to_hbm [thread:$0]  %s2061, 128, %s16, [#allocation19]
    $region101: #{tpu_custom_call.1} parent=1 // pred_fallthru
      _
    // Predicated region
    $region102: #{tpu_custom_call.1} parent=1 // pred_check
      _
    $region103: #{tpu_custom_call.1} parent=1 // pred_check_branch
      %2065 = sbr.rel (0) target = $region105
    $region104: #{tpu_custom_call.1} parent=1 // pred_region
      %2066 = dma.done [#allocation5], 256
    $region105: #{tpu_custom_call.1} parent=1 // pred_fallthru
      _
    // Predicated region
    $region106: #{tpu_custom_call.1} parent=1 // pred_check
      _
    $region107: #{tpu_custom_call.1} parent=1 // pred_check_branch
      %2068 = sbr.rel (0) target = $region109
    $region108: #{tpu_custom_call.1} parent=1 // pred_region
      %2069 = dma.done [#allocation19], 128
    $region109: #{tpu_custom_call.1} parent=1 // pred_fallthru
      _
    %2070 = vsyncpa [#allocation4], 1
    %2071 = vsyncpa [#allocation7], 1
    %2072 = vsyncpa [#allocation10], 1
    %2073 = vsyncpa [#allocation13], 1
    %2074 = vsyncpa [#allocation16], 1
    %2075 = vsyncpa [#allocation5], 1
    %2076 = vsyncpa [#allocation19], 1

</llo_original>
